<compile_context>
chip_gen: v7x
topology: tpu7x:2x2x1
jax: 0.10.0
libtpu: 0.0.40
codegen_flags: <defaults>
</compile_context>

<pallas_src>
import functools

import numpy as np
import jax
import jax.numpy as jnp
from jax import lax
from jax.experimental import pallas as pl
from jax.experimental.pallas import tpu as pltpu

EPS = 1e-5  # nn.GroupNorm default eps


def _resblock_kernel(x_ref, w1_ref, w2_ref, g1_ref, b1_ref, g2_ref, b2_ref,
                     gmat_ref, mask_ref, out_ref, *, H, W, conv_dtype, b_blk):
    """One grid step == b_blk images processed back-to-back.

    x_ref    : (b_blk, Cp, H*W) f32   channels on sublanes, flattened HW on lanes
    w*_ref   : (9, Cp, Cp) conv_dtype per-tap conv weights [tap, c_out, c_in]
    g*/b*    : (Cp, 1) f32            GroupNorm gamma / beta (0 on padded chans)
    gmat_ref : (Cp, Cp) f32           group membership * 1/(group_size*HW)
    mask_ref : (9, H*W) f32           per-tap validity masks (0 on halo)
    out_ref  : (b_blk, Cp, H*W) f32
    """
    HW = H * W

    def group_norm_relu(h, g_ref, b_ref):
        # Per-channel sum & sum-of-squares (lane reduction), reduced to per-group
        # values with one tiny matmul against the pre-scaled membership matrix.
        s1 = jnp.sum(h, axis=1, keepdims=True)                    # (Cp, 1)
        s2 = jnp.sum(h * h, axis=1, keepdims=True)                # (Cp, 1)
        stats = jnp.concatenate([s1, s2], axis=1)                 # (Cp, 2)
        gstats = jnp.dot(gmat_ref[...], stats,
                         preferred_element_type=jnp.float32)      # (Cp, 2): [mu, E[x^2]]
        mu = gstats[:, 0:1]
        var = jnp.maximum(gstats[:, 1:2] - mu * mu, 0.0)          # clamp: no rsqrt NaN
        inv = lax.rsqrt(var + EPS)
        hn = (h - mu) * inv * g_ref[...] + b_ref[...]
        return jnp.maximum(hn, 0.0)

    def conv3x3(h, w_ref):
        # 9 accumulating per-tap MXU dots.  Taps are circular lane rolls (XLU)
        # times boundary masks, in f32 (v5e-friendly), cast to conv_dtype only at
        # the MXU boundary.  No (9C, HW) im2col slab is ever materialized.
        acc = None
        for ky in range(3):
            for kx in range(3):
                t = ky * 3 + kx
                off = (ky - 1) * W + (kx - 1)
                if off == 0:
                    tap = h                                       # center tap, always valid
                else:
                    tap = pltpu.roll(h, (-off) % HW, 1) * mask_ref[t:t + 1, :]
                contrib = jnp.dot(w_ref[t], tap.astype(conv_dtype),
                                  preferred_element_type=jnp.float32)  # (Cp, HW) f32
                acc = contrib if acc is None else acc + contrib
        return acc

    for i in range(b_blk):                       # static unroll: images back-to-back
        h = group_norm_relu(x_ref[i], g1_ref, b1_ref)   # norm1 + relu
        h = conv3x3(h, w1_ref)                          # conv1 (bias=False)
        h = group_norm_relu(h, g2_ref, b2_ref)          # norm2 + relu
        h = conv3x3(h, w2_ref)                          # conv2 (bias=False)
        # Re-read x for the shortcut: the block is resident in VMEM, a late vld is
        # free and avoids holding x in vregs across both convs.
        out_ref[i] = (h + x_ref[i]).astype(out_ref.dtype)


def resblock_forward(x_nchw, w1, g1, b1, w2, g2, b2, *,
                     conv_dtype=jnp.bfloat16, b_blk=1):
    """ResBlock.forward(x): stride=1, downsample=None, inplanes == planes.

    x_nchw : (N, C, H, W) f32
    w1, w2 : (C, C, 3, 3) f32 (PyTorch OIHW, bias-free convs)
    g*/b*  : (C,) GroupNorm affine params (groups = min(32, C))
    conv_dtype : dtype fed to the MXU (bf16 default; f32 accumulation + f32 GN math)
    b_blk      : images per grid step (amortizes per-step overhead for large N)
    """
    # TODO(synk): optional `downsample` module / stride != 1 are not implemented.
    N, C, H, W = x_nchw.shape
    HW = H * W
    assert HW % 128 == 0, "roll+mask im2col assumes lane-dense H*W"  # TODO(synk): pad HW otherwise
    assert N % b_blk == 0
    groups = min(32, C)
    assert C % groups == 0
    group_size = C // groups

    # Pad channels to the sublane-pack multiple of conv_dtype (8 f32 / 16 bf16);
    # padded channels are exact zeros end-to-end (gamma/beta/weights padded with 0).
    sub = {4: 8, 2: 16, 1: 32}[np.dtype(conv_dtype).itemsize]
    Cp = ((C + sub - 1) // sub) * sub
    pad = Cp - C

    # NCHW -> (N, C, HW): pure metadata reshape (no transpose / extra HBM pass).
    x = x_nchw.reshape(N, C, HW).astype(jnp.float32)
    if pad:
        x = jnp.pad(x, ((0, 0), (0, pad), (0, 0)))

    def prep_w(w):  # OIHW -> (9, Cp, Cp) [tap, c_out, c_in], pre-cast to conv_dtype
        wt = jnp.transpose(w, (2, 3, 0, 1)).reshape(9, C, C)
        if pad:
            wt = jnp.pad(wt, ((0, 0), (0, pad), (0, pad)))
        return wt.astype(conv_dtype)

    def prep_affine(v):
        vr = v.reshape(C, 1).astype(jnp.float32)
        return jnp.pad(vr, ((0, pad), (0, 0))) if pad else vr

    w1m, w2m = prep_w(w1), prep_w(w2)
    g1r, b1r, g2r, b2r = (prep_affine(v) for v in (g1, b1, g2, b2))

    # Group-membership matrix with 1/(group_size*HW) folded in; padded channels get
    # a dummy group (their gamma/beta are 0, so they stay exactly 0).
    gid = jnp.arange(C, dtype=jnp.int32) // group_size
    if pad:
        gid = jnp.concatenate([gid, jnp.full((pad,), groups, jnp.int32)])
    gmat = (gid[:, None] == gid[None, :]).astype(jnp.float32) / float(group_size * HW)

    # Per-tap validity masks over the flattened spatial axis (zero-padding halo).
    yy, xx = jnp.meshgrid(jnp.arange(H), jnp.arange(W), indexing="ij")
    rows = []
    for ky in range(3):
        for kx in range(3):
            dy, dx = ky - 1, kx - 1
            valid = ((yy + dy >= 0) & (yy + dy < H) &
                     (xx + dx >= 0) & (xx + dx < W))
            rows.append(valid.reshape(HW))
    mask = jnp.stack(rows).astype(jnp.float32)                    # (9, HW)

    kernel = functools.partial(_resblock_kernel, H=H, W=W,
                               conv_dtype=conv_dtype, b_blk=b_blk)

    out = pl.pallas_call(
        kernel,
        out_shape=jax.ShapeDtypeStruct((N, Cp, HW), jnp.float32),
        grid_spec=pltpu.PrefetchScalarGridSpec(
            num_scalar_prefetch=0,
            grid=(N // b_blk,),
            in_specs=[
                pl.BlockSpec((b_blk, Cp, HW), lambda n: (n, 0, 0)),  # x
                pl.BlockSpec((9, Cp, Cp), lambda n: (0, 0, 0)),      # conv1 weights
                pl.BlockSpec((9, Cp, Cp), lambda n: (0, 0, 0)),      # conv2 weights
                pl.BlockSpec((Cp, 1), lambda n: (0, 0)),             # gamma1
                pl.BlockSpec((Cp, 1), lambda n: (0, 0)),             # beta1
                pl.BlockSpec((Cp, 1), lambda n: (0, 0)),             # gamma2
                pl.BlockSpec((Cp, 1), lambda n: (0, 0)),             # beta2
                pl.BlockSpec((Cp, Cp), lambda n: (0, 0)),            # group matrix (pre-scaled)
                pl.BlockSpec((9, HW), lambda n: (0, 0)),             # tap masks
            ],
            out_specs=pl.BlockSpec((b_blk, Cp, HW), lambda n: (n, 0, 0)),
        ),
        compiler_params=pltpu.CompilerParams(
            dimension_semantics=("parallel",),           # v7x: batch sharded over 2 TCs
            vmem_limit_bytes=64 * 1024 * 1024),
    )(x, w1m, w2m, g1r, b1r, g2r, b2r, gmat, mask)

    return out[:, :C, :].reshape(N, C, H, W)


def _ref_forward(x, w1, g1, b1, w2, g2, b2):
    """Pure-JAX reference matching the PyTorch ResBlock (NCHW, f32)."""
    C = x.shape[1]
    groups = min(32, C)

    def gn(h, gamma, beta):
        N, Cc, H, W = h.shape
        hg = h.reshape(N, groups, -1)
        mu = hg.mean(-1, keepdims=True)
        var = hg.var(-1, keepdims=True)
        hn = ((hg - mu) * lax.rsqrt(var + EPS)).reshape(N, Cc, H, W)
        return hn * gamma.reshape(1, -1, 1, 1) + beta.reshape(1, -1, 1, 1)

    def conv(h, w):
        return lax.conv_general_dilated(
            h, w, (1, 1), ((1, 1), (1, 1)),
            dimension_numbers=("NCHW", "OIHW", "NCHW"),
            preferred_element_type=jnp.float32,
            precision=lax.Precision.HIGHEST)

    out = jax.nn.relu(gn(x, g1, b1))
    out = conv(out, w1)
    out = jax.nn.relu(gn(out, g2, b2))
    out = conv(out, w2)
    return out + x


if __name__ == "__main__":
    N, C, H, W = 2, 4, 16, 16   # inplanes = planes = 4 -> GroupNorm with 4 groups
    key = jax.random.PRNGKey(0)
    ks = jax.random.split(key, 7)

    x = jax.random.normal(ks[0], (N, C, H, W), jnp.float32)
    scale = 1.0 / (3 * 3 * C) ** 0.5
    w1 = jax.random.normal(ks[1], (C, C, 3, 3), jnp.float32) * scale
    w2 = jax.random.normal(ks[2], (C, C, 3, 3), jnp.float32) * scale
    g1 = 1.0 + 0.1 * jax.random.normal(ks[3], (C,), jnp.float32)
    b1 = 0.1 * jax.random.normal(ks[4], (C,), jnp.float32)
    g2 = 1.0 + 0.1 * jax.random.normal(ks[5], (C,), jnp.float32)
    b2 = 0.1 * jax.random.normal(ks[6], (C,), jnp.float32)

    ref = _ref_forward(x, w1, g1, b1, w2, g2, b2)

    # Default path: bf16 at the MXU (f32 accumulation, f32 GN/ReLU math).
    out = jax.block_until_ready(resblock_forward(x, w1, g1, b1, w2, g2, b2))
    assert out.shape == (N, C, H, W) and out.dtype == jnp.float32
    assert bool(jnp.allclose(out, ref, atol=2e-2, rtol=2e-2)), "mismatch (bf16)"

    # f32-at-the-MXU path with 2 images per grid step (fatter step; tight match).
    out_f32 = jax.block_until_ready(
        resblock_forward(x, w1, g1, b1, w2, g2, b2,
                         conv_dtype=jnp.float32, b_blk=2))
    assert bool(jnp.allclose(out_f32, ref, atol=5e-3, rtol=5e-3)), "mismatch (f32)"

    print("KERNEL_OK")
</pallas_src>

<mosaic_0001>
module attributes {stable_mosaic.version = 11 : i64} {
  func.func @_resblock_kernel(%arg0: i32, %arg1: memref<1x16x256xf32, #tpu.memory_space<vmem>>, %arg2: memref<9x16x16xbf16, #tpu.memory_space<vmem>>, %arg3: memref<9x16x16xbf16, #tpu.memory_space<vmem>>, %arg4: memref<16x1xf32, #tpu.memory_space<vmem>>, %arg5: memref<16x1xf32, #tpu.memory_space<vmem>>, %arg6: memref<16x1xf32, #tpu.memory_space<vmem>>, %arg7: memref<16x1xf32, #tpu.memory_space<vmem>>, %arg8: memref<16x16xf32, #tpu.memory_space<vmem>>, %arg9: memref<9x256xf32, #tpu.memory_space<vmem>>, %arg10: memref<1x16x256xf32, #tpu.memory_space<vmem>>) attributes {dimension_semantics = [#tpu.dimension_semantics<parallel>], iteration_bounds = array<i64: 2>, scalar_prefetch = 0 : i64, scratch_operands = 0 : i64, tpu.core_type = #tpu.core_type<tc>, window_params = [{transform_indices = @transform_0, window_bounds = array<i64: 1, 16, 256>}, {pipeline_mode = #tpu.pipeline_mode<synchronous>, transform_indices = @transform_1, window_bounds = array<i64: 9, 16, 16>}, {pipeline_mode = #tpu.pipeline_mode<synchronous>, transform_indices = @transform_2, window_bounds = array<i64: 9, 16, 16>}, {pipeline_mode = #tpu.pipeline_mode<synchronous>, transform_indices = @transform_3, window_bounds = array<i64: 16, 1>}, {pipeline_mode = #tpu.pipeline_mode<synchronous>, transform_indices = @transform_4, window_bounds = array<i64: 16, 1>}, {pipeline_mode = #tpu.pipeline_mode<synchronous>, transform_indices = @transform_5, window_bounds = array<i64: 16, 1>}, {pipeline_mode = #tpu.pipeline_mode<synchronous>, transform_indices = @transform_6, window_bounds = array<i64: 16, 1>}, {pipeline_mode = #tpu.pipeline_mode<synchronous>, transform_indices = @transform_7, window_bounds = array<i64: 16, 16>}, {pipeline_mode = #tpu.pipeline_mode<synchronous>, transform_indices = @transform_8, window_bounds = array<i64: 9, 256>}, {transform_indices = @transform_9, window_bounds = array<i64: 1, 16, 256>}]} {
    %c0 = arith.constant 0 : index
    %c0_0 = arith.constant 0 : index
    %c0_1 = arith.constant 0 : index
    %0 = vector.load %arg1[%c0, %c0_0, %c0_1] : memref<1x16x256xf32, #tpu.memory_space<vmem>>, vector<1x16x256xf32>
    %1 = vector.shape_cast %0 : vector<1x16x256xf32> to vector<16x256xf32>
    %cst = arith.constant dense<0.000000e+00> : vector<16xf32>
    %2 = vector.multi_reduction <add>, %1, %cst [1] : vector<16x256xf32> to vector<16xf32>
    %3 = vector.shape_cast %2 : vector<16xf32> to vector<16x1xf32>
    %4 = arith.mulf %1, %1 : vector<16x256xf32>
    %cst_2 = arith.constant dense<0.000000e+00> : vector<16xf32>
    %5 = vector.multi_reduction <add>, %4, %cst_2 [1] : vector<16x256xf32> to vector<16xf32>
    %6 = vector.shape_cast %5 : vector<16xf32> to vector<16x1xf32>
    %7 = tpu.concatenate %3, %6 in 1 : vector<16x1xf32>, vector<16x1xf32> -> vector<16x2xf32>
    %c0_3 = arith.constant 0 : index
    %c0_4 = arith.constant 0 : index
    %8 = vector.load %arg8[%c0_3, %c0_4] : memref<16x16xf32, #tpu.memory_space<vmem>>, vector<16x16xf32>
    %cst_5 = arith.constant dense<0.000000e+00> : vector<16x2xf32>
    %9 = tpu.matmul %8, %7, %cst_5 {dimension_numbers = #tpu.dot_dimension_numbers<[1], [0], [0], [1], [0, 0, 1, 1], [], []>} : vector<16x16xf32>, vector<16x2xf32>, vector<16x2xf32> -> vector<16x2xf32>
    %10 = vector.extract_strided_slice %9 {offsets = [0, 0], sizes = [16, 1], strides = [1, 1]} : vector<16x2xf32> to vector<16x1xf32>
    %11 = vector.extract_strided_slice %9 {offsets = [0, 1], sizes = [16, 1], strides = [1, 1]} : vector<16x2xf32> to vector<16x1xf32>
    %12 = arith.mulf %10, %10 : vector<16x1xf32>
    %13 = arith.subf %11, %12 : vector<16x1xf32>
    %cst_6 = arith.constant 0.000000e+00 : f32
    %14 = vector.broadcast %cst_6 : f32 to vector<16x1xf32>
    %15 = arith.maximumf %13, %14 : vector<16x1xf32>
    %cst_7 = arith.constant 9.99999974E-6 : f32
    %16 = vector.broadcast %cst_7 : f32 to vector<16x1xf32>
    %17 = arith.addf %15, %16 : vector<16x1xf32>
    %18 = math.rsqrt %17 : vector<16x1xf32>
    %19 = vector.broadcast %10 : vector<16x1xf32> to vector<16x256xf32>
    %20 = arith.subf %1, %19 : vector<16x256xf32>
    %21 = vector.broadcast %18 : vector<16x1xf32> to vector<16x256xf32>
    %22 = arith.mulf %20, %21 : vector<16x256xf32>
    %c0_8 = arith.constant 0 : index
    %c0_9 = arith.constant 0 : index
    %23 = vector.load %arg4[%c0_8, %c0_9] : memref<16x1xf32, #tpu.memory_space<vmem>>, vector<16x1xf32>
    %24 = vector.broadcast %23 : vector<16x1xf32> to vector<16x256xf32>
    %25 = arith.mulf %22, %24 : vector<16x256xf32>
    %c0_10 = arith.constant 0 : index
    %c0_11 = arith.constant 0 : index
    %26 = vector.load %arg5[%c0_10, %c0_11] : memref<16x1xf32, #tpu.memory_space<vmem>>, vector<16x1xf32>
    %27 = vector.broadcast %26 : vector<16x1xf32> to vector<16x256xf32>
    %28 = arith.addf %25, %27 : vector<16x256xf32>
    %cst_12 = arith.constant 0.000000e+00 : f32
    %29 = vector.broadcast %cst_12 : f32 to vector<16x256xf32>
    %30 = arith.maximumf %28, %29 : vector<16x256xf32>
    %c17_i32 = arith.constant 17 : i32
    %31 = tpu.dynamic_rotate %30 by %c17_i32 dim 1 : vector<16x256xf32>, i32 -> vector<16x256xf32>
    %c0_13 = arith.constant 0 : index
    %c0_14 = arith.constant 0 : index
    %32 = vector.load %arg9[%c0_13, %c0_14] : memref<9x256xf32, #tpu.memory_space<vmem>>, vector<1x256xf32>
    %33 = vector.broadcast %32 : vector<1x256xf32> to vector<16x256xf32>
    %34 = arith.mulf %31, %33 : vector<16x256xf32>
    %c0_15 = arith.constant 0 : index
    %c0_16 = arith.constant 0 : index
    %c0_17 = arith.constant 0 : index
    %35 = vector.load %arg2[%c0_15, %c0_16, %c0_17] : memref<9x16x16xbf16, #tpu.memory_space<vmem>>, vector<1x16x16xbf16>
    %36 = vector.shape_cast %35 : vector<1x16x16xbf16> to vector<16x16xbf16>
    %37 = arith.truncf %34 : vector<16x256xf32> to vector<16x256xbf16>
    %cst_18 = arith.constant dense<0.000000e+00> : vector<16x256xf32>
    %38 = tpu.matmul %36, %37, %cst_18 {dimension_numbers = #tpu.dot_dimension_numbers<[1], [0], [0], [1], [0, 0, 1, 1], [], []>} : vector<16x16xbf16>, vector<16x256xbf16>, vector<16x256xf32> -> vector<16x256xf32>
    %c16_i32 = arith.constant 16 : i32
    %39 = tpu.dynamic_rotate %30 by %c16_i32 dim 1 : vector<16x256xf32>, i32 -> vector<16x256xf32>
    %c1 = arith.constant 1 : index
    %c0_19 = arith.constant 0 : index
    %40 = vector.load %arg9[%c1, %c0_19] : memref<9x256xf32, #tpu.memory_space<vmem>>, vector<1x256xf32>
    %41 = vector.broadcast %40 : vector<1x256xf32> to vector<16x256xf32>
    %42 = arith.mulf %39, %41 : vector<16x256xf32>
    %c1_20 = arith.constant 1 : index
    %c0_21 = arith.constant 0 : index
    %c0_22 = arith.constant 0 : index
    %43 = vector.load %arg2[%c1_20, %c0_21, %c0_22] : memref<9x16x16xbf16, #tpu.memory_space<vmem>>, vector<1x16x16xbf16>
    %44 = vector.shape_cast %43 : vector<1x16x16xbf16> to vector<16x16xbf16>
    %45 = arith.truncf %42 : vector<16x256xf32> to vector<16x256xbf16>
    %cst_23 = arith.constant dense<0.000000e+00> : vector<16x256xf32>
    %46 = tpu.matmul %44, %45, %cst_23 {dimension_numbers = #tpu.dot_dimension_numbers<[1], [0], [0], [1], [0, 0, 1, 1], [], []>} : vector<16x16xbf16>, vector<16x256xbf16>, vector<16x256xf32> -> vector<16x256xf32>
    %47 = arith.addf %38, %46 : vector<16x256xf32>
    %c15_i32 = arith.constant 15 : i32
    %48 = tpu.dynamic_rotate %30 by %c15_i32 dim 1 : vector<16x256xf32>, i32 -> vector<16x256xf32>
    %c2 = arith.constant 2 : index
    %c0_24 = arith.constant 0 : index
    %49 = vector.load %arg9[%c2, %c0_24] : memref<9x256xf32, #tpu.memory_space<vmem>>, vector<1x256xf32>
    %50 = vector.broadcast %49 : vector<1x256xf32> to vector<16x256xf32>
    %51 = arith.mulf %48, %50 : vector<16x256xf32>
    %c2_25 = arith.constant 2 : index
    %c0_26 = arith.constant 0 : index
    %c0_27 = arith.constant 0 : index
    %52 = vector.load %arg2[%c2_25, %c0_26, %c0_27] : memref<9x16x16xbf16, #tpu.memory_space<vmem>>, vector<1x16x16xbf16>
    %53 = vector.shape_cast %52 : vector<1x16x16xbf16> to vector<16x16xbf16>
    %54 = arith.truncf %51 : vector<16x256xf32> to vector<16x256xbf16>
    %cst_28 = arith.constant dense<0.000000e+00> : vector<16x256xf32>
    %55 = tpu.matmul %53, %54, %cst_28 {dimension_numbers = #tpu.dot_dimension_numbers<[1], [0], [0], [1], [0, 0, 1, 1], [], []>} : vector<16x16xbf16>, vector<16x256xbf16>, vector<16x256xf32> -> vector<16x256xf32>
    %56 = arith.addf %47, %55 : vector<16x256xf32>
    %c1_i32 = arith.constant 1 : i32
    %57 = tpu.dynamic_rotate %30 by %c1_i32 dim 1 : vector<16x256xf32>, i32 -> vector<16x256xf32>
    %c3 = arith.constant 3 : index
    %c0_29 = arith.constant 0 : index
    %58 = vector.load %arg9[%c3, %c0_29] : memref<9x256xf32, #tpu.memory_space<vmem>>, vector<1x256xf32>
    %59 = vector.broadcast %58 : vector<1x256xf32> to vector<16x256xf32>
    %60 = arith.mulf %57, %59 : vector<16x256xf32>
    %c3_30 = arith.constant 3 : index
    %c0_31 = arith.constant 0 : index
    %c0_32 = arith.constant 0 : index
    %61 = vector.load %arg2[%c3_30, %c0_31, %c0_32] : memref<9x16x16xbf16, #tpu.memory_space<vmem>>, vector<1x16x16xbf16>
    %62 = vector.shape_cast %61 : vector<1x16x16xbf16> to vector<16x16xbf16>
    %63 = arith.truncf %60 : vector<16x256xf32> to vector<16x256xbf16>
    %cst_33 = arith.constant dense<0.000000e+00> : vector<16x256xf32>
    %64 = tpu.matmul %62, %63, %cst_33 {dimension_numbers = #tpu.dot_dimension_numbers<[1], [0], [0], [1], [0, 0, 1, 1], [], []>} : vector<16x16xbf16>, vector<16x256xbf16>, vector<16x256xf32> -> vector<16x256xf32>
    %65 = arith.addf %56, %64 : vector<16x256xf32>
    %c4 = arith.constant 4 : index
    %c0_34 = arith.constant 0 : index
    %c0_35 = arith.constant 0 : index
    %66 = vector.load %arg2[%c4, %c0_34, %c0_35] : memref<9x16x16xbf16, #tpu.memory_space<vmem>>, vector<1x16x16xbf16>
    %67 = vector.shape_cast %66 : vector<1x16x16xbf16> to vector<16x16xbf16>
    %68 = arith.truncf %30 : vector<16x256xf32> to vector<16x256xbf16>
    %cst_36 = arith.constant dense<0.000000e+00> : vector<16x256xf32>
    %69 = tpu.matmul %67, %68, %cst_36 {dimension_numbers = #tpu.dot_dimension_numbers<[1], [0], [0], [1], [0, 0, 1, 1], [], []>} : vector<16x16xbf16>, vector<16x256xbf16>, vector<16x256xf32> -> vector<16x256xf32>
    %70 = arith.addf %65, %69 : vector<16x256xf32>
    %c255_i32 = arith.constant 255 : i32
    %71 = tpu.dynamic_rotate %30 by %c255_i32 dim 1 : vector<16x256xf32>, i32 -> vector<16x256xf32>
    %c5 = arith.constant 5 : index
    %c0_37 = arith.constant 0 : index
    %72 = vector.load %arg9[%c5, %c0_37] : memref<9x256xf32, #tpu.memory_space<vmem>>, vector<1x256xf32>
    %73 = vector.broadcast %72 : vector<1x256xf32> to vector<16x256xf32>
    %74 = arith.mulf %71, %73 : vector<16x256xf32>
    %c5_38 = arith.constant 5 : index
    %c0_39 = arith.constant 0 : index
    %c0_40 = arith.constant 0 : index
    %75 = vector.load %arg2[%c5_38, %c0_39, %c0_40] : memref<9x16x16xbf16, #tpu.memory_space<vmem>>, vector<1x16x16xbf16>
    %76 = vector.shape_cast %75 : vector<1x16x16xbf16> to vector<16x16xbf16>
    %77 = arith.truncf %74 : vector<16x256xf32> to vector<16x256xbf16>
    %cst_41 = arith.constant dense<0.000000e+00> : vector<16x256xf32>
    %78 = tpu.matmul %76, %77, %cst_41 {dimension_numbers = #tpu.dot_dimension_numbers<[1], [0], [0], [1], [0, 0, 1, 1], [], []>} : vector<16x16xbf16>, vector<16x256xbf16>, vector<16x256xf32> -> vector<16x256xf32>
    %79 = arith.addf %70, %78 : vector<16x256xf32>
    %c241_i32 = arith.constant 241 : i32
    %80 = tpu.dynamic_rotate %30 by %c241_i32 dim 1 : vector<16x256xf32>, i32 -> vector<16x256xf32>
    %c6 = arith.constant 6 : index
    %c0_42 = arith.constant 0 : index
    %81 = vector.load %arg9[%c6, %c0_42] : memref<9x256xf32, #tpu.memory_space<vmem>>, vector<1x256xf32>
    %82 = vector.broadcast %81 : vector<1x256xf32> to vector<16x256xf32>
    %83 = arith.mulf %80, %82 : vector<16x256xf32>
    %c6_43 = arith.constant 6 : index
    %c0_44 = arith.constant 0 : index
    %c0_45 = arith.constant 0 : index
    %84 = vector.load %arg2[%c6_43, %c0_44, %c0_45] : memref<9x16x16xbf16, #tpu.memory_space<vmem>>, vector<1x16x16xbf16>
    %85 = vector.shape_cast %84 : vector<1x16x16xbf16> to vector<16x16xbf16>
    %86 = arith.truncf %83 : vector<16x256xf32> to vector<16x256xbf16>
    %cst_46 = arith.constant dense<0.000000e+00> : vector<16x256xf32>
    %87 = tpu.matmul %85, %86, %cst_46 {dimension_numbers = #tpu.dot_dimension_numbers<[1], [0], [0], [1], [0, 0, 1, 1], [], []>} : vector<16x16xbf16>, vector<16x256xbf16>, vector<16x256xf32> -> vector<16x256xf32>
    %88 = arith.addf %79, %87 : vector<16x256xf32>
    %c240_i32 = arith.constant 240 : i32
    %89 = tpu.dynamic_rotate %30 by %c240_i32 dim 1 : vector<16x256xf32>, i32 -> vector<16x256xf32>
    %c7 = arith.constant 7 : index
    %c0_47 = arith.constant 0 : index
    %90 = vector.load %arg9[%c7, %c0_47] : memref<9x256xf32, #tpu.memory_space<vmem>>, vector<1x256xf32>
    %91 = vector.broadcast %90 : vector<1x256xf32> to vector<16x256xf32>
    %92 = arith.mulf %89, %91 : vector<16x256xf32>
    %c7_48 = arith.constant 7 : index
    %c0_49 = arith.constant 0 : index
    %c0_50 = arith.constant 0 : index
    %93 = vector.load %arg2[%c7_48, %c0_49, %c0_50] : memref<9x16x16xbf16, #tpu.memory_space<vmem>>, vector<1x16x16xbf16>
    %94 = vector.shape_cast %93 : vector<1x16x16xbf16> to vector<16x16xbf16>
    %95 = arith.truncf %92 : vector<16x256xf32> to vector<16x256xbf16>
    %cst_51 = arith.constant dense<0.000000e+00> : vector<16x256xf32>
    %96 = tpu.matmul %94, %95, %cst_51 {dimension_numbers = #tpu.dot_dimension_numbers<[1], [0], [0], [1], [0, 0, 1, 1], [], []>} : vector<16x16xbf16>, vector<16x256xbf16>, vector<16x256xf32> -> vector<16x256xf32>
    %97 = arith.addf %88, %96 : vector<16x256xf32>
    %c239_i32 = arith.constant 239 : i32
    %98 = tpu.dynamic_rotate %30 by %c239_i32 dim 1 : vector<16x256xf32>, i32 -> vector<16x256xf32>
    %c8 = arith.constant 8 : index
    %c0_52 = arith.constant 0 : index
    %99 = vector.load %arg9[%c8, %c0_52] : memref<9x256xf32, #tpu.memory_space<vmem>>, vector<1x256xf32>
    %100 = vector.broadcast %99 : vector<1x256xf32> to vector<16x256xf32>
    %101 = arith.mulf %98, %100 : vector<16x256xf32>
    %c8_53 = arith.constant 8 : index
    %c0_54 = arith.constant 0 : index
    %c0_55 = arith.constant 0 : index
    %102 = vector.load %arg2[%c8_53, %c0_54, %c0_55] : memref<9x16x16xbf16, #tpu.memory_space<vmem>>, vector<1x16x16xbf16>
    %103 = vector.shape_cast %102 : vector<1x16x16xbf16> to vector<16x16xbf16>
    %104 = arith.truncf %101 : vector<16x256xf32> to vector<16x256xbf16>
    %cst_56 = arith.constant dense<0.000000e+00> : vector<16x256xf32>
    %105 = tpu.matmul %103, %104, %cst_56 {dimension_numbers = #tpu.dot_dimension_numbers<[1], [0], [0], [1], [0, 0, 1, 1], [], []>} : vector<16x16xbf16>, vector<16x256xbf16>, vector<16x256xf32> -> vector<16x256xf32>
    %106 = arith.addf %97, %105 : vector<16x256xf32>
    %cst_57 = arith.constant dense<0.000000e+00> : vector<16xf32>
    %107 = vector.multi_reduction <add>, %106, %cst_57 [1] : vector<16x256xf32> to vector<16xf32>
    %108 = vector.shape_cast %107 : vector<16xf32> to vector<16x1xf32>
    %109 = arith.mulf %106, %106 : vector<16x256xf32>
    %cst_58 = arith.constant dense<0.000000e+00> : vector<16xf32>
    %110 = vector.multi_reduction <add>, %109, %cst_58 [1] : vector<16x256xf32> to vector<16xf32>
    %111 = vector.shape_cast %110 : vector<16xf32> to vector<16x1xf32>
    %112 = tpu.concatenate %108, %111 in 1 : vector<16x1xf32>, vector<16x1xf32> -> vector<16x2xf32>
    %c0_59 = arith.constant 0 : index
    %c0_60 = arith.constant 0 : index
    %113 = vector.load %arg8[%c0_59, %c0_60] : memref<16x16xf32, #tpu.memory_space<vmem>>, vector<16x16xf32>
    %cst_61 = arith.constant dense<0.000000e+00> : vector<16x2xf32>
    %114 = tpu.matmul %113, %112, %cst_61 {dimension_numbers = #tpu.dot_dimension_numbers<[1], [0], [0], [1], [0, 0, 1, 1], [], []>} : vector<16x16xf32>, vector<16x2xf32>, vector<16x2xf32> -> vector<16x2xf32>
    %115 = vector.extract_strided_slice %114 {offsets = [0, 0], sizes = [16, 1], strides = [1, 1]} : vector<16x2xf32> to vector<16x1xf32>
    %116 = vector.extract_strided_slice %114 {offsets = [0, 1], sizes = [16, 1], strides = [1, 1]} : vector<16x2xf32> to vector<16x1xf32>
    %117 = arith.mulf %115, %115 : vector<16x1xf32>
    %118 = arith.subf %116, %117 : vector<16x1xf32>
    %cst_62 = arith.constant 0.000000e+00 : f32
    %119 = vector.broadcast %cst_62 : f32 to vector<16x1xf32>
    %120 = arith.maximumf %118, %119 : vector<16x1xf32>
    %cst_63 = arith.constant 9.99999974E-6 : f32
    %121 = vector.broadcast %cst_63 : f32 to vector<16x1xf32>
    %122 = arith.addf %120, %121 : vector<16x1xf32>
    %123 = math.rsqrt %122 : vector<16x1xf32>
    %124 = vector.broadcast %115 : vector<16x1xf32> to vector<16x256xf32>
    %125 = arith.subf %106, %124 : vector<16x256xf32>
    %126 = vector.broadcast %123 : vector<16x1xf32> to vector<16x256xf32>
    %127 = arith.mulf %125, %126 : vector<16x256xf32>
    %c0_64 = arith.constant 0 : index
    %c0_65 = arith.constant 0 : index
    %128 = vector.load %arg6[%c0_64, %c0_65] : memref<16x1xf32, #tpu.memory_space<vmem>>, vector<16x1xf32>
    %129 = vector.broadcast %128 : vector<16x1xf32> to vector<16x256xf32>
    %130 = arith.mulf %127, %129 : vector<16x256xf32>
    %c0_66 = arith.constant 0 : index
    %c0_67 = arith.constant 0 : index
    %131 = vector.load %arg7[%c0_66, %c0_67] : memref<16x1xf32, #tpu.memory_space<vmem>>, vector<16x1xf32>
    %132 = vector.broadcast %131 : vector<16x1xf32> to vector<16x256xf32>
    %133 = arith.addf %130, %132 : vector<16x256xf32>
    %cst_68 = arith.constant 0.000000e+00 : f32
    %134 = vector.broadcast %cst_68 : f32 to vector<16x256xf32>
    %135 = arith.maximumf %133, %134 : vector<16x256xf32>
    %c17_i32_69 = arith.constant 17 : i32
    %136 = tpu.dynamic_rotate %135 by %c17_i32_69 dim 1 : vector<16x256xf32>, i32 -> vector<16x256xf32>
    %c0_70 = arith.constant 0 : index
    %c0_71 = arith.constant 0 : index
    %137 = vector.load %arg9[%c0_70, %c0_71] : memref<9x256xf32, #tpu.memory_space<vmem>>, vector<1x256xf32>
    %138 = vector.broadcast %137 : vector<1x256xf32> to vector<16x256xf32>
    %139 = arith.mulf %136, %138 : vector<16x256xf32>
    %c0_72 = arith.constant 0 : index
    %c0_73 = arith.constant 0 : index
    %c0_74 = arith.constant 0 : index
    %140 = vector.load %arg3[%c0_72, %c0_73, %c0_74] : memref<9x16x16xbf16, #tpu.memory_space<vmem>>, vector<1x16x16xbf16>
    %141 = vector.shape_cast %140 : vector<1x16x16xbf16> to vector<16x16xbf16>
    %142 = arith.truncf %139 : vector<16x256xf32> to vector<16x256xbf16>
    %cst_75 = arith.constant dense<0.000000e+00> : vector<16x256xf32>
    %143 = tpu.matmul %141, %142, %cst_75 {dimension_numbers = #tpu.dot_dimension_numbers<[1], [0], [0], [1], [0, 0, 1, 1], [], []>} : vector<16x16xbf16>, vector<16x256xbf16>, vector<16x256xf32> -> vector<16x256xf32>
    %c16_i32_76 = arith.constant 16 : i32
    %144 = tpu.dynamic_rotate %135 by %c16_i32_76 dim 1 : vector<16x256xf32>, i32 -> vector<16x256xf32>
    %c1_77 = arith.constant 1 : index
    %c0_78 = arith.constant 0 : index
    %145 = vector.load %arg9[%c1_77, %c0_78] : memref<9x256xf32, #tpu.memory_space<vmem>>, vector<1x256xf32>
    %146 = vector.broadcast %145 : vector<1x256xf32> to vector<16x256xf32>
    %147 = arith.mulf %144, %146 : vector<16x256xf32>
    %c1_79 = arith.constant 1 : index
    %c0_80 = arith.constant 0 : index
    %c0_81 = arith.constant 0 : index
    %148 = vector.load %arg3[%c1_79, %c0_80, %c0_81] : memref<9x16x16xbf16, #tpu.memory_space<vmem>>, vector<1x16x16xbf16>
    %149 = vector.shape_cast %148 : vector<1x16x16xbf16> to vector<16x16xbf16>
    %150 = arith.truncf %147 : vector<16x256xf32> to vector<16x256xbf16>
    %cst_82 = arith.constant dense<0.000000e+00> : vector<16x256xf32>
    %151 = tpu.matmul %149, %150, %cst_82 {dimension_numbers = #tpu.dot_dimension_numbers<[1], [0], [0], [1], [0, 0, 1, 1], [], []>} : vector<16x16xbf16>, vector<16x256xbf16>, vector<16x256xf32> -> vector<16x256xf32>
    %152 = arith.addf %143, %151 : vector<16x256xf32>
    %c15_i32_83 = arith.constant 15 : i32
    %153 = tpu.dynamic_rotate %135 by %c15_i32_83 dim 1 : vector<16x256xf32>, i32 -> vector<16x256xf32>
    %c2_84 = arith.constant 2 : index
    %c0_85 = arith.constant 0 : index
    %154 = vector.load %arg9[%c2_84, %c0_85] : memref<9x256xf32, #tpu.memory_space<vmem>>, vector<1x256xf32>
    %155 = vector.broadcast %154 : vector<1x256xf32> to vector<16x256xf32>
    %156 = arith.mulf %153, %155 : vector<16x256xf32>
    %c2_86 = arith.constant 2 : index
    %c0_87 = arith.constant 0 : index
    %c0_88 = arith.constant 0 : index
    %157 = vector.load %arg3[%c2_86, %c0_87, %c0_88] : memref<9x16x16xbf16, #tpu.memory_space<vmem>>, vector<1x16x16xbf16>
    %158 = vector.shape_cast %157 : vector<1x16x16xbf16> to vector<16x16xbf16>
    %159 = arith.truncf %156 : vector<16x256xf32> to vector<16x256xbf16>
    %cst_89 = arith.constant dense<0.000000e+00> : vector<16x256xf32>
    %160 = tpu.matmul %158, %159, %cst_89 {dimension_numbers = #tpu.dot_dimension_numbers<[1], [0], [0], [1], [0, 0, 1, 1], [], []>} : vector<16x16xbf16>, vector<16x256xbf16>, vector<16x256xf32> -> vector<16x256xf32>
    %161 = arith.addf %152, %160 : vector<16x256xf32>
    %c1_i32_90 = arith.constant 1 : i32
    %162 = tpu.dynamic_rotate %135 by %c1_i32_90 dim 1 : vector<16x256xf32>, i32 -> vector<16x256xf32>
    %c3_91 = arith.constant 3 : index
    %c0_92 = arith.constant 0 : index
    %163 = vector.load %arg9[%c3_91, %c0_92] : memref<9x256xf32, #tpu.memory_space<vmem>>, vector<1x256xf32>
    %164 = vector.broadcast %163 : vector<1x256xf32> to vector<16x256xf32>
    %165 = arith.mulf %162, %164 : vector<16x256xf32>
    %c3_93 = arith.constant 3 : index
    %c0_94 = arith.constant 0 : index
    %c0_95 = arith.constant 0 : index
    %166 = vector.load %arg3[%c3_93, %c0_94, %c0_95] : memref<9x16x16xbf16, #tpu.memory_space<vmem>>, vector<1x16x16xbf16>
    %167 = vector.shape_cast %166 : vector<1x16x16xbf16> to vector<16x16xbf16>
    %168 = arith.truncf %165 : vector<16x256xf32> to vector<16x256xbf16>
    %cst_96 = arith.constant dense<0.000000e+00> : vector<16x256xf32>
    %169 = tpu.matmul %167, %168, %cst_96 {dimension_numbers = #tpu.dot_dimension_numbers<[1], [0], [0], [1], [0, 0, 1, 1], [], []>} : vector<16x16xbf16>, vector<16x256xbf16>, vector<16x256xf32> -> vector<16x256xf32>
    %170 = arith.addf %161, %169 : vector<16x256xf32>
    %c4_97 = arith.constant 4 : index
    %c0_98 = arith.constant 0 : index
    %c0_99 = arith.constant 0 : index
    %171 = vector.load %arg3[%c4_97, %c0_98, %c0_99] : memref<9x16x16xbf16, #tpu.memory_space<vmem>>, vector<1x16x16xbf16>
    %172 = vector.shape_cast %171 : vector<1x16x16xbf16> to vector<16x16xbf16>
    %173 = arith.truncf %135 : vector<16x256xf32> to vector<16x256xbf16>
    %cst_100 = arith.constant dense<0.000000e+00> : vector<16x256xf32>
    %174 = tpu.matmul %172, %173, %cst_100 {dimension_numbers = #tpu.dot_dimension_numbers<[1], [0], [0], [1], [0, 0, 1, 1], [], []>} : vector<16x16xbf16>, vector<16x256xbf16>, vector<16x256xf32> -> vector<16x256xf32>
    %175 = arith.addf %170, %174 : vector<16x256xf32>
    %c255_i32_101 = arith.constant 255 : i32
    %176 = tpu.dynamic_rotate %135 by %c255_i32_101 dim 1 : vector<16x256xf32>, i32 -> vector<16x256xf32>
    %c5_102 = arith.constant 5 : index
    %c0_103 = arith.constant 0 : index
    %177 = vector.load %arg9[%c5_102, %c0_103] : memref<9x256xf32, #tpu.memory_space<vmem>>, vector<1x256xf32>
    %178 = vector.broadcast %177 : vector<1x256xf32> to vector<16x256xf32>
    %179 = arith.mulf %176, %178 : vector<16x256xf32>
    %c5_104 = arith.constant 5 : index
    %c0_105 = arith.constant 0 : index
    %c0_106 = arith.constant 0 : index
    %180 = vector.load %arg3[%c5_104, %c0_105, %c0_106] : memref<9x16x16xbf16, #tpu.memory_space<vmem>>, vector<1x16x16xbf16>
    %181 = vector.shape_cast %180 : vector<1x16x16xbf16> to vector<16x16xbf16>
    %182 = arith.truncf %179 : vector<16x256xf32> to vector<16x256xbf16>
    %cst_107 = arith.constant dense<0.000000e+00> : vector<16x256xf32>
    %183 = tpu.matmul %181, %182, %cst_107 {dimension_numbers = #tpu.dot_dimension_numbers<[1], [0], [0], [1], [0, 0, 1, 1], [], []>} : vector<16x16xbf16>, vector<16x256xbf16>, vector<16x256xf32> -> vector<16x256xf32>
    %184 = arith.addf %175, %183 : vector<16x256xf32>
    %c241_i32_108 = arith.constant 241 : i32
    %185 = tpu.dynamic_rotate %135 by %c241_i32_108 dim 1 : vector<16x256xf32>, i32 -> vector<16x256xf32>
    %c6_109 = arith.constant 6 : index
    %c0_110 = arith.constant 0 : index
    %186 = vector.load %arg9[%c6_109, %c0_110] : memref<9x256xf32, #tpu.memory_space<vmem>>, vector<1x256xf32>
    %187 = vector.broadcast %186 : vector<1x256xf32> to vector<16x256xf32>
    %188 = arith.mulf %185, %187 : vector<16x256xf32>
    %c6_111 = arith.constant 6 : index
    %c0_112 = arith.constant 0 : index
    %c0_113 = arith.constant 0 : index
    %189 = vector.load %arg3[%c6_111, %c0_112, %c0_113] : memref<9x16x16xbf16, #tpu.memory_space<vmem>>, vector<1x16x16xbf16>
    %190 = vector.shape_cast %189 : vector<1x16x16xbf16> to vector<16x16xbf16>
    %191 = arith.truncf %188 : vector<16x256xf32> to vector<16x256xbf16>
    %cst_114 = arith.constant dense<0.000000e+00> : vector<16x256xf32>
    %192 = tpu.matmul %190, %191, %cst_114 {dimension_numbers = #tpu.dot_dimension_numbers<[1], [0], [0], [1], [0, 0, 1, 1], [], []>} : vector<16x16xbf16>, vector<16x256xbf16>, vector<16x256xf32> -> vector<16x256xf32>
    %193 = arith.addf %184, %192 : vector<16x256xf32>
    %c240_i32_115 = arith.constant 240 : i32
    %194 = tpu.dynamic_rotate %135 by %c240_i32_115 dim 1 : vector<16x256xf32>, i32 -> vector<16x256xf32>
    %c7_116 = arith.constant 7 : index
    %c0_117 = arith.constant 0 : index
    %195 = vector.load %arg9[%c7_116, %c0_117] : memref<9x256xf32, #tpu.memory_space<vmem>>, vector<1x256xf32>
    %196 = vector.broadcast %195 : vector<1x256xf32> to vector<16x256xf32>
    %197 = arith.mulf %194, %196 : vector<16x256xf32>
    %c7_118 = arith.constant 7 : index
    %c0_119 = arith.constant 0 : index
    %c0_120 = arith.constant 0 : index
    %198 = vector.load %arg3[%c7_118, %c0_119, %c0_120] : memref<9x16x16xbf16, #tpu.memory_space<vmem>>, vector<1x16x16xbf16>
    %199 = vector.shape_cast %198 : vector<1x16x16xbf16> to vector<16x16xbf16>
    %200 = arith.truncf %197 : vector<16x256xf32> to vector<16x256xbf16>
    %cst_121 = arith.constant dense<0.000000e+00> : vector<16x256xf32>
    %201 = tpu.matmul %199, %200, %cst_121 {dimension_numbers = #tpu.dot_dimension_numbers<[1], [0], [0], [1], [0, 0, 1, 1], [], []>} : vector<16x16xbf16>, vector<16x256xbf16>, vector<16x256xf32> -> vector<16x256xf32>
    %202 = arith.addf %193, %201 : vector<16x256xf32>
    %c239_i32_122 = arith.constant 239 : i32
    %203 = tpu.dynamic_rotate %135 by %c239_i32_122 dim 1 : vector<16x256xf32>, i32 -> vector<16x256xf32>
    %c8_123 = arith.constant 8 : index
    %c0_124 = arith.constant 0 : index
    %204 = vector.load %arg9[%c8_123, %c0_124] : memref<9x256xf32, #tpu.memory_space<vmem>>, vector<1x256xf32>
    %205 = vector.broadcast %204 : vector<1x256xf32> to vector<16x256xf32>
    %206 = arith.mulf %203, %205 : vector<16x256xf32>
    %c8_125 = arith.constant 8 : index
    %c0_126 = arith.constant 0 : index
    %c0_127 = arith.constant 0 : index
    %207 = vector.load %arg3[%c8_125, %c0_126, %c0_127] : memref<9x16x16xbf16, #tpu.memory_space<vmem>>, vector<1x16x16xbf16>
    %208 = vector.shape_cast %207 : vector<1x16x16xbf16> to vector<16x16xbf16>
    %209 = arith.truncf %206 : vector<16x256xf32> to vector<16x256xbf16>
    %cst_128 = arith.constant dense<0.000000e+00> : vector<16x256xf32>
    %210 = tpu.matmul %208, %209, %cst_128 {dimension_numbers = #tpu.dot_dimension_numbers<[1], [0], [0], [1], [0, 0, 1, 1], [], []>} : vector<16x16xbf16>, vector<16x256xbf16>, vector<16x256xf32> -> vector<16x256xf32>
    %211 = arith.addf %202, %210 : vector<16x256xf32>
    %c0_129 = arith.constant 0 : index
    %c0_130 = arith.constant 0 : index
    %c0_131 = arith.constant 0 : index
    %212 = vector.load %arg1[%c0_129, %c0_130, %c0_131] : memref<1x16x256xf32, #tpu.memory_space<vmem>>, vector<1x16x256xf32>
    %213 = vector.shape_cast %212 : vector<1x16x256xf32> to vector<16x256xf32>
    %214 = arith.addf %211, %213 : vector<16x256xf32>
    %c0_132 = arith.constant 0 : index
    %c0_133 = arith.constant 0 : index
    %c0_134 = arith.constant 0 : index
    %215 = vector.load %arg10[%c0_132, %c0_133, %c0_134] : memref<1x16x256xf32, #tpu.memory_space<vmem>>, vector<1x16x256xf32>
    %216 = vector.shape_cast %215 : vector<1x16x256xf32> to vector<16x256xf32>
    %217 = vector.shape_cast %214 : vector<16x256xf32> to vector<1x16x256xf32>
    tpu.vector_store %arg10[%c0_132, %c0_133, %c0_134], %217 {strides = array<i32>} : memref<1x16x256xf32, #tpu.memory_space<vmem>>, vector<1x16x256xf32>,
    return
  }
  func.func @transform_0(%arg0: i32) -> (i32, i32, i32) {
    %c0_i32 = arith.constant 0 : i32
    %c0_i32_0 = arith.constant 0 : i32
    %c0_i32_1 = arith.constant 0 : i32
    return %arg0, %c0_i32, %c0_i32_0 : i32, i32, i32
  }
  func.func @transform_1(%arg0: i32) -> (i32, i32, i32) {
    %c0_i32 = arith.constant 0 : i32
    %c0_i32_0 = arith.constant 0 : i32
    %c0_i32_1 = arith.constant 0 : i32
    %c0_i32_2 = arith.constant 0 : i32
    return %c0_i32, %c0_i32_0, %c0_i32_1 : i32, i32, i32
  }
  func.func @transform_2(%arg0: i32) -> (i32, i32, i32) {
    %c0_i32 = arith.constant 0 : i32
    %c0_i32_0 = arith.constant 0 : i32
    %c0_i32_1 = arith.constant 0 : i32
    %c0_i32_2 = arith.constant 0 : i32
    return %c0_i32, %c0_i32_0, %c0_i32_1 : i32, i32, i32
  }
  func.func @transform_3(%arg0: i32) -> (i32, i32) {
    %c0_i32 = arith.constant 0 : i32
    %c0_i32_0 = arith.constant 0 : i32
    %c0_i32_1 = arith.constant 0 : i32
    return %c0_i32, %c0_i32_0 : i32, i32
  }
  func.func @transform_4(%arg0: i32) -> (i32, i32) {
    %c0_i32 = arith.constant 0 : i32
    %c0_i32_0 = arith.constant 0 : i32
    %c0_i32_1 = arith.constant 0 : i32
    return %c0_i32, %c0_i32_0 : i32, i32
  }
  func.func @transform_5(%arg0: i32) -> (i32, i32) {
    %c0_i32 = arith.constant 0 : i32
    %c0_i32_0 = arith.constant 0 : i32
    %c0_i32_1 = arith.constant 0 : i32
    return %c0_i32, %c0_i32_0 : i32, i32
  }
  func.func @transform_6(%arg0: i32) -> (i32, i32) {
    %c0_i32 = arith.constant 0 : i32
    %c0_i32_0 = arith.constant 0 : i32
    %c0_i32_1 = arith.constant 0 : i32
    return %c0_i32, %c0_i32_0 : i32, i32
  }
  func.func @transform_7(%arg0: i32) -> (i32, i32) {
    %c0_i32 = arith.constant 0 : i32
    %c0_i32_0 = arith.constant 0 : i32
    %c0_i32_1 = arith.constant 0 : i32
    return %c0_i32, %c0_i32_0 : i32, i32
  }
  func.func @transform_8(%arg0: i32) -> (i32, i32) {
    %c0_i32 = arith.constant 0 : i32
    %c0_i32_0 = arith.constant 0 : i32
    %c0_i32_1 = arith.constant 0 : i32
    return %c0_i32, %c0_i32_0 : i32, i32
  }
  func.func @transform_9(%arg0: i32) -> (i32, i32, i32) {
    %c0_i32 = arith.constant 0 : i32
    %c0_i32_0 = arith.constant 0 : i32
    %c0_i32_1 = arith.constant 0 : i32
    return %arg0, %c0_i32, %c0_i32_0 : i32, i32, i32
  }
}

</mosaic_0001>

<llo_original>
// kernel: tpu_custom_call.1
$region0: #{tpu_custom_call.1}
  #allocation0 [shape = 'u32[]', space=smem, size = 0x4, offset = 0x4, fixed_abs, tag = 'smem constant byte address 0x4 - core index']
  #allocation1 [shape = 'u32[144,128]{1,0:T(1,128)}', space=vmem, size = 0x12000, scoped, tag = 'internal scratch']
  %s0 = inlined_call_operand.hbm [shape: f32[2,16,256], index: 0, kind: input, shape index: {}]
  %s1 = inlined_call_operand.hbm [shape: bf16[9,16,16], index: 1, kind: input, shape index: {}]
  %s2 = inlined_call_operand.hbm [shape: bf16[9,16,16], index: 2, kind: input, shape index: {}]
  %s3 = inlined_call_operand.hbm [shape: f32[16,1], index: 3, kind: input, shape index: {}]
  %s4 = inlined_call_operand.hbm [shape: f32[16,1], index: 4, kind: input, shape index: {}]
  %s5 = inlined_call_operand.hbm [shape: f32[16,1], index: 5, kind: input, shape index: {}]
  %s6 = inlined_call_operand.hbm [shape: f32[16,1], index: 6, kind: input, shape index: {}]
  %s7 = inlined_call_operand.hbm [shape: f32[16,16], index: 7, kind: input, shape index: {}]
  %s8 = inlined_call_operand.hbm [shape: f32[9,256], index: 8, kind: input, shape index: {}]
  %s9 = inlined_call_operand.hbm [shape: f32[2,16,256], index: 9, kind: output, shape index: {}]
  %s10 = sld [smem:[#allocation0]]
  $region105: #{tpu_custom_call.1} parent=0
    _
  %s12 = ssub.s32 1, %s10
  %s13 = scalar_select 0, %s12, %s10
  $region1: #{tpu_custom_call.1} parent=0
    #allocation2 [shape = 'u8[32768]{0}', space=vmem, size = 0x8000, scoped, tag = 'input window, operand 0']
    #allocation3 [shape = 's32[2]{0}', space=sflag, size = 0x8, scoped, tag = 'scoped memory for tpu_custom_call.1']
    #allocation4 [shape = 's32[2]{0}', space=sflag, size = 0x8, scoped, tag = 'scoped memory for tpu_custom_call.1']
    #allocation5 [shape = 'u8[36864]{0}', space=vmem, size = 0x9000, scoped, tag = 'input window, operand 1, single buffered']
    #allocation6 [shape = 's32[1]{0}', space=sflag, size = 0x4, scoped, tag = 'scoped memory for tpu_custom_call.1']
    #allocation7 [shape = 'u8[36864]{0}', space=vmem, size = 0x9000, scoped, tag = 'input window, operand 2, single buffered']
    #allocation8 [shape = 'u8[8192]{0}', space=vmem, size = 0x2000, scoped, tag = 'input window, operand 3, single buffered']
    #allocation9 [shape = 's32[1]{0}', space=sflag, size = 0x4, scoped, tag = 'scoped memory for tpu_custom_call.1']
    #allocation10 [shape = 'u8[8192]{0}', space=vmem, size = 0x2000, scoped, tag = 'input window, operand 4, single buffered']
    #allocation11 [shape = 'u8[8192]{0}', space=vmem, size = 0x2000, scoped, tag = 'input window, operand 5, single buffered']
    #allocation12 [shape = 's32[1]{0}', space=sflag, size = 0x4, scoped, tag = 'scoped memory for tpu_custom_call.1']
    #allocation13 [shape = 'u8[8192]{0}', space=vmem, size = 0x2000, scoped, tag = 'input window, operand 6, single buffered']
    #allocation14 [shape = 'u8[8192]{0}', space=vmem, size = 0x2000, scoped, tag = 'input window, operand 7, single buffered']
    #allocation15 [shape = 's32[1]{0}', space=sflag, size = 0x4, scoped, tag = 'scoped memory for tpu_custom_call.1']
    #allocation16 [shape = 'u8[16384]{0}', space=vmem, size = 0x4000, scoped, tag = 'input window, operand 8, single buffered']
    #allocation17 [shape = 'u8[32768]{0}', space=vmem, size = 0x8000, scoped, tag = 'output window, operand 0']
    %14 = vsyncpa [#allocation3], 0
    %s15 = scalar_lea.sflag [#allocation3], 1
    %16 = vsyncpa %s15, 0
    %17 = vsyncpa [#allocation6], 0
    %18 = vsyncpa [#allocation9], 0
    %19 = vsyncpa [#allocation12], 0
    %20 = vsyncpa [#allocation15], 0
    %21 = vsyncpa [#allocation4], 0
    %s22 = scalar_lea.sflag [#allocation4], 1
    %23 = vsyncpa %s22, 0
    loop: start=0, step=1, limit=4
    $region2: #{tpu_custom_call.1} parent=1 // loop_pre_header
      _
    $region3: #{tpu_custom_call.1} parent=1 // loop_header
      %s25 = sphi 0, %s29
      %p26 = scmp.ge.s32.totalorder %s25, 4
      %s35 = sphi 0, %s37
      %s38 = sphi 0, %s35
      %s39 = sphi 0, %s38
      %s55 = sphi 0, %s39
      %s59 = sphi 0, %s59
      %s61 = sphi 0, %s59
      %s62 = sphi 0, %s61
      %s76 = sphi 0, %s62
      %s80 = sphi 0, %s80
      %s82 = sphi 0, %s80
      %s83 = sphi 0, %s82
      %s97 = sphi 0, %s83
      %s101 = sphi 0, %s101
      %s103 = sphi 0, %s101
      %s104 = sphi 0, %s103
      %s118 = sphi 0, %s104
      %s122 = sphi 0, %s122
      %s124 = sphi 0, %s122
      %s125 = sphi 0, %s124
      %s139 = sphi 0, %s125
      %s143 = sphi 0, %s143
      %s145 = sphi 0, %s143
      %s146 = sphi 0, %s145
      %s160 = sphi 0, %s146
      %s164 = sphi 0, %s164
      %s166 = sphi 0, %s164
      %s167 = sphi 0, %s166
      %s181 = sphi 0, %s167
      %s185 = sphi 0, %s185
      %s187 = sphi 0, %s185
      %s188 = sphi 0, %s187
      %s202 = sphi 0, %s188
      %s206 = sphi 0, %s206
      %s208 = sphi 0, %s206
      %s209 = sphi 0, %s208
      %s223 = sphi 0, %s209
      %s229 = sphi 0, %s231
      %s232 = sphi 0, %s229
      %s233 = sphi 0, %s232
      %s249 = sphi 0, %s233
    $region4: #{tpu_custom_call.1} parent=1 // loop_header_branch
      %28 = sbr.rel (%p26) target = $region8
    $region5: #{tpu_custom_call.1} parent=1 // loop_body
      %s30 = ssub.s32 %s25, 1
      %s31 = ssub.s32 %s25, 2
      %s32 = sadd.s32 %s25, 1
      %s33 = ssub.s32 %s25, %s32
      %p34 = scmp.eq.s32.totalorder %s33, 0
      %s36 = sadd.s32 %s35, 1
      %s37 = scalar_select %p34, %s35, %s36
      %p40 = pneg %p34
      %p41 = scmp.eq.s32.totalorder %s25, 1
      %p42 = por %p40, %p41
      %p43 = scmp.ne.s32.totalorder %s35, %s38
      %p44 = scmp.eq.s32.totalorder %s25, 0
      %p45 = por %p43, %p44
      %p46 = scmp.ne.s32.totalorder %s35, %s38
      %p47 = scmp.eq.s32.totalorder %s30, 1
      %p48 = por %p46, %p47
      %p49 = scmp.ne.s32.totalorder %s38, %s39
      %p50 = scmp.eq.s32.totalorder %s30, 0
      %p51 = por %p49, %p50
      %p52 = scmp.ne.s32.totalorder %s38, %s39
      %p53 = scmp.eq.s32.totalorder %s31, 1
      %p54 = por %p52, %p53
      %p56 = scmp.ne.s32.totalorder %s39, %s55
      %p57 = scmp.eq.s32.totalorder %s31, 0
      %p58 = por %p56, %p57
      %s60 = sadd.s32 %s59, 1
      %p63 = scmp.eq.s32.totalorder %s25, 1
      %p64 = scmp.ne.s32.totalorder %s59, %s61
      %p65 = scmp.eq.s32.totalorder %s25, 0
      %p66 = por %p64, %p65
      %p67 = scmp.ne.s32.totalorder %s59, %s61
      %p68 = scmp.eq.s32.totalorder %s30, 1
      %p69 = por %p67, %p68
      %p70 = scmp.ne.s32.totalorder %s61, %s62
      %p71 = scmp.eq.s32.totalorder %s30, 0
      %p72 = por %p70, %p71
      %p73 = scmp.ne.s32.totalorder %s61, %s62
      %p74 = scmp.eq.s32.totalorder %s31, 1
      %p75 = por %p73, %p74
      %p77 = scmp.ne.s32.totalorder %s62, %s76
      %p78 = scmp.eq.s32.totalorder %s31, 0
      %p79 = por %p77, %p78
      %s81 = sadd.s32 %s80, 1
      %p84 = scmp.eq.s32.totalorder %s25, 1
      %p85 = scmp.ne.s32.totalorder %s80, %s82
      %p86 = scmp.eq.s32.totalorder %s25, 0
      %p87 = por %p85, %p86
      %p88 = scmp.ne.s32.totalorder %s80, %s82
      %p89 = scmp.eq.s32.totalorder %s30, 1
      %p90 = por %p88, %p89
      %p91 = scmp.ne.s32.totalorder %s82, %s83
      %p92 = scmp.eq.s32.totalorder %s30, 0
      %p93 = por %p91, %p92
      %p94 = scmp.ne.s32.totalorder %s82, %s83
      %p95 = scmp.eq.s32.totalorder %s31, 1
      %p96 = por %p94, %p95
      %p98 = scmp.ne.s32.totalorder %s83, %s97
      %p99 = scmp.eq.s32.totalorder %s31, 0
      %p100 = por %p98, %p99
      %s102 = sadd.s32 %s101, 1
      %p105 = scmp.eq.s32.totalorder %s25, 1
      %p106 = scmp.ne.s32.totalorder %s101, %s103
      %p107 = scmp.eq.s32.totalorder %s25, 0
      %p108 = por %p106, %p107
      %p109 = scmp.ne.s32.totalorder %s101, %s103
      %p110 = scmp.eq.s32.totalorder %s30, 1
      %p111 = por %p109, %p110
      %p112 = scmp.ne.s32.totalorder %s103, %s104
      %p113 = scmp.eq.s32.totalorder %s30, 0
      %p114 = por %p112, %p113
      %p115 = scmp.ne.s32.totalorder %s103, %s104
      %p116 = scmp.eq.s32.totalorder %s31, 1
      %p117 = por %p115, %p116
      %p119 = scmp.ne.s32.totalorder %s104, %s118
      %p120 = scmp.eq.s32.totalorder %s31, 0
      %p121 = por %p119, %p120
      %s123 = sadd.s32 %s122, 1
      %p126 = scmp.eq.s32.totalorder %s25, 1
      %p127 = scmp.ne.s32.totalorder %s122, %s124
      %p128 = scmp.eq.s32.totalorder %s25, 0
      %p129 = por %p127, %p128
      %p130 = scmp.ne.s32.totalorder %s122, %s124
      %p131 = scmp.eq.s32.totalorder %s30, 1
      %p132 = por %p130, %p131
      %p133 = scmp.ne.s32.totalorder %s124, %s125
      %p134 = scmp.eq.s32.totalorder %s30, 0
      %p135 = por %p133, %p134
      %p136 = scmp.ne.s32.totalorder %s124, %s125
      %p137 = scmp.eq.s32.totalorder %s31, 1
      %p138 = por %p136, %p137
      %p140 = scmp.ne.s32.totalorder %s125, %s139
      %p141 = scmp.eq.s32.totalorder %s31, 0
      %p142 = por %p140, %p141
      %s144 = sadd.s32 %s143, 1
      %p147 = scmp.eq.s32.totalorder %s25, 1
      %p148 = scmp.ne.s32.totalorder %s143, %s145
      %p149 = scmp.eq.s32.totalorder %s25, 0
      %p150 = por %p148, %p149
      %p151 = scmp.ne.s32.totalorder %s143, %s145
      %p152 = scmp.eq.s32.totalorder %s30, 1
      %p153 = por %p151, %p152
      %p154 = scmp.ne.s32.totalorder %s145, %s146
      %p155 = scmp.eq.s32.totalorder %s30, 0
      %p156 = por %p154, %p155
      %p157 = scmp.ne.s32.totalorder %s145, %s146
      %p158 = scmp.eq.s32.totalorder %s31, 1
      %p159 = por %p157, %p158
      %p161 = scmp.ne.s32.totalorder %s146, %s160
      %p162 = scmp.eq.s32.totalorder %s31, 0
      %p163 = por %p161, %p162
      %s165 = sadd.s32 %s164, 1
      %p168 = scmp.eq.s32.totalorder %s25, 1
      %p169 = scmp.ne.s32.totalorder %s164, %s166
      %p170 = scmp.eq.s32.totalorder %s25, 0
      %p171 = por %p169, %p170
      %p172 = scmp.ne.s32.totalorder %s164, %s166
      %p173 = scmp.eq.s32.totalorder %s30, 1
      %p174 = por %p172, %p173
      %p175 = scmp.ne.s32.totalorder %s166, %s167
      %p176 = scmp.eq.s32.totalorder %s30, 0
      %p177 = por %p175, %p176
      %p178 = scmp.ne.s32.totalorder %s166, %s167
      %p179 = scmp.eq.s32.totalorder %s31, 1
      %p180 = por %p178, %p179
      %p182 = scmp.ne.s32.totalorder %s167, %s181
      %p183 = scmp.eq.s32.totalorder %s31, 0
      %p184 = por %p182, %p183
      %s186 = sadd.s32 %s185, 1
      %p189 = scmp.eq.s32.totalorder %s25, 1
      %p190 = scmp.ne.s32.totalorder %s185, %s187
      %p191 = scmp.eq.s32.totalorder %s25, 0
      %p192 = por %p190, %p191
      %p193 = scmp.ne.s32.totalorder %s185, %s187
      %p194 = scmp.eq.s32.totalorder %s30, 1
      %p195 = por %p193, %p194
      %p196 = scmp.ne.s32.totalorder %s187, %s188
      %p197 = scmp.eq.s32.totalorder %s30, 0
      %p198 = por %p196, %p197
      %p199 = scmp.ne.s32.totalorder %s187, %s188
      %p200 = scmp.eq.s32.totalorder %s31, 1
      %p201 = por %p199, %p200
      %p203 = scmp.ne.s32.totalorder %s188, %s202
      %p204 = scmp.eq.s32.totalorder %s31, 0
      %p205 = por %p203, %p204
      %s207 = sadd.s32 %s206, 1
      %p210 = scmp.eq.s32.totalorder %s25, 1
      %p211 = scmp.ne.s32.totalorder %s206, %s208
      %p212 = scmp.eq.s32.totalorder %s25, 0
      %p213 = por %p211, %p212
      %p214 = scmp.ne.s32.totalorder %s206, %s208
      %p215 = scmp.eq.s32.totalorder %s30, 1
      %p216 = por %p214, %p215
      %p217 = scmp.ne.s32.totalorder %s208, %s209
      %p218 = scmp.eq.s32.totalorder %s30, 0
      %p219 = por %p217, %p218
      %p220 = scmp.ne.s32.totalorder %s208, %s209
      %p221 = scmp.eq.s32.totalorder %s31, 1
      %p222 = por %p220, %p221
      %p224 = scmp.ne.s32.totalorder %s209, %s223
      %p225 = scmp.eq.s32.totalorder %s31, 0
      %p226 = por %p224, %p225
      %s227 = ssub.s32 %s25, %s32
      %p228 = scmp.eq.s32.totalorder %s227, 0
      %s230 = sadd.s32 %s229, 1
      %s231 = scalar_select %p228, %s229, %s230
      %p234 = pneg %p228
      %p235 = scmp.eq.s32.totalorder %s25, 1
      %p236 = por %p234, %p235
      %p237 = scmp.ne.s32.totalorder %s229, %s232
      %p238 = scmp.eq.s32.totalorder %s25, 0
      %p239 = por %p237, %p238
      %p240 = scmp.ne.s32.totalorder %s229, %s232
      %p241 = scmp.eq.s32.totalorder %s30, 1
      %p242 = por %p240, %p241
      %p243 = scmp.ne.s32.totalorder %s232, %s233
      %p244 = scmp.eq.s32.totalorder %s30, 0
      %p245 = por %p243, %p244
      %p246 = scmp.ne.s32.totalorder %s232, %s233
      %p247 = scmp.eq.s32.totalorder %s31, 1
      %p248 = por %p246, %p247
      %p250 = scmp.ne.s32.totalorder %s233, %s249
      %p251 = scmp.eq.s32.totalorder %s31, 0
      %p252 = por %p250, %p251
      %p253 = scmp.le.s32.totalorder 1, %s25
      %p254 = scmp.lt.s32.totalorder %s25, 3
      %p255 = pnand %p253, %p254
      %p256 = pneg %p255
      // Predicated region
      $region9: #{tpu_custom_call.1} parent=5 // pred_check
        _
      $region10: #{tpu_custom_call.1} parent=5 // pred_check_branch
        %258 = sbr.rel (%p255) target = $region12
      $region11: #{tpu_custom_call.1} parent=5 // pred_region
        %s259 = ssub.s32 %s25, 1
        // Predicated region
        $region13: #{tpu_custom_call.1} parent=11 // pred_check
          %p260 = pneg %p72
        $region14: #{tpu_custom_call.1} parent=11 // pred_check_branch
          %262 = sbr.rel (%p260) target = $region16
        $region15: #{tpu_custom_call.1} parent=11 // pred_region
          %s264 = ssub.s32 1152, 1152
          %265 = vsyncadd [#allocation6], %s264
          %s266 = sshll.u32 [#allocation5], 4
          %s267 = int_to_ptr.vmem [resolvable:$true] %s266
          %272 = dma.hbm_to_vmem [thread:$0]  %s1, 1152, %s267, [#allocation6], 64, 64, 4
        $region16: #{tpu_custom_call.1} parent=11 // pred_fallthru
          _
        // Predicated region
        $region17: #{tpu_custom_call.1} parent=11 // pred_check
          %p273 = pneg %p93
        $region18: #{tpu_custom_call.1} parent=11 // pred_check_branch
          %275 = sbr.rel (%p273) target = $region20
        $region19: #{tpu_custom_call.1} parent=11 // pred_region
          %s277 = ssub.s32 1152, 1152
          %278 = vsyncadd [#allocation6], %s277
          %s279 = sshll.u32 [#allocation7], 4
          %s280 = int_to_ptr.vmem [resolvable:$true] %s279
          %285 = dma.hbm_to_vmem [thread:$0]  %s2, 1152, %s280, [#allocation6], 64, 64, 4
        $region20: #{tpu_custom_call.1} parent=11 // pred_fallthru
          _
        // Predicated region
        $region21: #{tpu_custom_call.1} parent=11 // pred_check
          %p286 = pneg %p114
        $region22: #{tpu_custom_call.1} parent=11 // pred_check_branch
          %288 = sbr.rel (%p286) target = $region24
        $region23: #{tpu_custom_call.1} parent=11 // pred_region
          %s290 = ssub.s32 256, 256
          %291 = vsyncadd [#allocation9], %s290
          %s292 = sshll.u32 [#allocation8], 4
          %s293 = int_to_ptr.vmem [resolvable:$true] %s292
          %298 = dma.hbm_to_vmem [thread:$0]  %s3, 256, %s293, [#allocation9], 128, 128, 8
        $region24: #{tpu_custom_call.1} parent=11 // pred_fallthru
          _
        // Predicated region
        $region25: #{tpu_custom_call.1} parent=11 // pred_check
          %p299 = pneg %p135
        $region26: #{tpu_custom_call.1} parent=11 // pred_check_branch
          %301 = sbr.rel (%p299) target = $region28
        $region27: #{tpu_custom_call.1} parent=11 // pred_region
          %s303 = ssub.s32 256, 256
          %304 = vsyncadd [#allocation9], %s303
          %s305 = sshll.u32 [#allocation10], 4
          %s306 = int_to_ptr.vmem [resolvable:$true] %s305
          %311 = dma.hbm_to_vmem [thread:$0]  %s4, 256, %s306, [#allocation9], 128, 128, 8
        $region28: #{tpu_custom_call.1} parent=11 // pred_fallthru
          _
        // Predicated region
        $region29: #{tpu_custom_call.1} parent=11 // pred_check
          %p312 = pneg %p156
        $region30: #{tpu_custom_call.1} parent=11 // pred_check_branch
          %314 = sbr.rel (%p312) target = $region32
        $region31: #{tpu_custom_call.1} parent=11 // pred_region
          %s316 = ssub.s32 256, 256
          %317 = vsyncadd [#allocation12], %s316
          %s318 = sshll.u32 [#allocation11], 4
          %s319 = int_to_ptr.vmem [resolvable:$true] %s318
          %324 = dma.hbm_to_vmem [thread:$0]  %s5, 256, %s319, [#allocation12], 128, 128, 8
        $region32: #{tpu_custom_call.1} parent=11 // pred_fallthru
          _
        // Predicated region
        $region33: #{tpu_custom_call.1} parent=11 // pred_check
          %p325 = pneg %p177
        $region34: #{tpu_custom_call.1} parent=11 // pred_check_branch
          %327 = sbr.rel (%p325) target = $region36
        $region35: #{tpu_custom_call.1} parent=11 // pred_region
          %s329 = ssub.s32 256, 256
          %330 = vsyncadd [#allocation12], %s329
          %s331 = sshll.u32 [#allocation13], 4
          %s332 = int_to_ptr.vmem [resolvable:$true] %s331
          %337 = dma.hbm_to_vmem [thread:$0]  %s6, 256, %s332, [#allocation12], 128, 128, 8
        $region36: #{tpu_custom_call.1} parent=11 // pred_fallthru
          _
        // Predicated region
        $region37: #{tpu_custom_call.1} parent=11 // pred_check
          %p338 = pneg %p198
        $region38: #{tpu_custom_call.1} parent=11 // pred_check_branch
          %340 = sbr.rel (%p338) target = $region40
        $region39: #{tpu_custom_call.1} parent=11 // pred_region
          %s342 = ssub.s32 256, 256
          %343 = vsyncadd [#allocation15], %s342
          %s344 = sshll.u32 [#allocation14], 4
          %s345 = int_to_ptr.vmem [resolvable:$true] %s344
          %350 = dma.hbm_to_vmem [thread:$0]  %s7, 256, %s345, [#allocation15], 128, 128, 8
        $region40: #{tpu_custom_call.1} parent=11 // pred_fallthru
          _
        // Predicated region
        $region41: #{tpu_custom_call.1} parent=11 // pred_check
          %p351 = pneg %p219
        $region42: #{tpu_custom_call.1} parent=11 // pred_check_branch
          %353 = sbr.rel (%p351) target = $region44
        $region43: #{tpu_custom_call.1} parent=11 // pred_region
          %s355 = ssub.s32 512, 512
          %356 = vsyncadd [#allocation15], %s355
          %s357 = sshll.u32 [#allocation16], 4
          %s358 = int_to_ptr.vmem [resolvable:$true] %s357
          %363 = dma.hbm_to_vmem [thread:$0]  %s8, 512, %s358, [#allocation15], 256, 256, 16
        $region44: #{tpu_custom_call.1} parent=11 // pred_fallthru
          _
      $region12: #{tpu_custom_call.1} parent=5 // pred_fallthru
        _
      %p364 = scmp.lt.s32.totalorder %s25, 2
      // Predicated region
      $region45: #{tpu_custom_call.1} parent=5 // pred_check
        %p365 = pneg %p364
      $region46: #{tpu_custom_call.1} parent=5 // pred_check_branch
        %367 = sbr.rel (%p365) target = $region48
      $region47: #{tpu_custom_call.1} parent=5 // pred_region
        // Predicated region
        $region49: #{tpu_custom_call.1} parent=47 // pred_check
          %p368 = pneg %p45
        $region50: #{tpu_custom_call.1} parent=47 // pred_check_branch
          %370 = sbr.rel (%p368) target = $region52
        $region51: #{tpu_custom_call.1} parent=47 // pred_region
          %s371 = sand.u32 %s35, 1
          %s372 = scalar_lea.sflag [#allocation3], %s371
          %s373 = sand.u32 %s35, 1
          %s374 = smul.addr %s373, 32
          %s375 = scalar_lea.vmem [#allocation2], %s374
          %s377 = ssub.s32 512, 512
          %378 = vsyncadd %s372, %s377
          %s379 = smul.addr %s25, 4
          %s380 = smul.addr %s379, 128
          %s381 = scalar_lea.hbm %s0, %s380
          %s382 = sshll.u32 %s375, 4
          %s383 = int_to_ptr.vmem [resolvable:$true] %s382
          %388 = dma.hbm_to_vmem [thread:$0]  %s381, 512, %s383, %s372, 256, 256, 16
        $region52: #{tpu_custom_call.1} parent=47 // pred_fallthru
          _
      $region48: #{tpu_custom_call.1} parent=5 // pred_fallthru
        _
      %p389 = scmp.le.s32.totalorder 1, %s25
      %p390 = scmp.lt.s32.totalorder %s25, 3
      %p391 = pnand %p389, %p390
      %p392 = pneg %p391
      // Predicated region
      $region53: #{tpu_custom_call.1} parent=5 // pred_check
        _
      $region54: #{tpu_custom_call.1} parent=5 // pred_check_branch
        %394 = sbr.rel (%p391) target = $region56
      $region55: #{tpu_custom_call.1} parent=5 // pred_region
        %s395 = ssub.s32 %s25, 1
        %s396 = sand.u32 %s38, 1
        %s397 = scalar_lea.sflag [#allocation3], %s396
        %s398 = sand.u32 %s38, 1
        %s399 = smul.addr %s398, 32
        %s400 = scalar_lea.vmem [#allocation2], %s399
        // Predicated region
        $region57: #{tpu_custom_call.1} parent=55 // pred_check
          %p401 = pneg %p51
        $region58: #{tpu_custom_call.1} parent=55 // pred_check_branch
          %403 = sbr.rel (%p401) target = $region60
        $region59: #{tpu_custom_call.1} parent=55 // pred_region
          %404 = dma.done %s397, 512
        $region60: #{tpu_custom_call.1} parent=55 // pred_fallthru
          _
        // Predicated region
        $region61: #{tpu_custom_call.1} parent=55 // pred_check
          %p405 = pneg %p72
        $region62: #{tpu_custom_call.1} parent=55 // pred_check_branch
          %407 = sbr.rel (%p405) target = $region64
        $region63: #{tpu_custom_call.1} parent=55 // pred_region
          %408 = dma.done [#allocation6], 1152
        $region64: #{tpu_custom_call.1} parent=55 // pred_fallthru
          _
        // Predicated region
        $region65: #{tpu_custom_call.1} parent=55 // pred_check
          %p409 = pneg %p93
        $region66: #{tpu_custom_call.1} parent=55 // pred_check_branch
          %411 = sbr.rel (%p409) target = $region68
        $region67: #{tpu_custom_call.1} parent=55 // pred_region
          %412 = dma.done [#allocation6], 1152
        $region68: #{tpu_custom_call.1} parent=55 // pred_fallthru
          _
        // Predicated region
        $region69: #{tpu_custom_call.1} parent=55 // pred_check
          %p413 = pneg %p114
        $region70: #{tpu_custom_call.1} parent=55 // pred_check_branch
          %415 = sbr.rel (%p413) target = $region72
        $region71: #{tpu_custom_call.1} parent=55 // pred_region
          %416 = dma.done [#allocation9], 256
        $region72: #{tpu_custom_call.1} parent=55 // pred_fallthru
          _
        // Predicated region
        $region73: #{tpu_custom_call.1} parent=55 // pred_check
          %p417 = pneg %p135
        $region74: #{tpu_custom_call.1} parent=55 // pred_check_branch
          %419 = sbr.rel (%p417) target = $region76
        $region75: #{tpu_custom_call.1} parent=55 // pred_region
          %420 = dma.done [#allocation9], 256
        $region76: #{tpu_custom_call.1} parent=55 // pred_fallthru
          _
        // Predicated region
        $region77: #{tpu_custom_call.1} parent=55 // pred_check
          %p421 = pneg %p156
        $region78: #{tpu_custom_call.1} parent=55 // pred_check_branch
          %423 = sbr.rel (%p421) target = $region80
        $region79: #{tpu_custom_call.1} parent=55 // pred_region
          %424 = dma.done [#allocation12], 256
        $region80: #{tpu_custom_call.1} parent=55 // pred_fallthru
          _
        // Predicated region
        $region81: #{tpu_custom_call.1} parent=55 // pred_check
          %p425 = pneg %p177
        $region82: #{tpu_custom_call.1} parent=55 // pred_check_branch
          %427 = sbr.rel (%p425) target = $region84
        $region83: #{tpu_custom_call.1} parent=55 // pred_region
          %428 = dma.done [#allocation12], 256
        $region84: #{tpu_custom_call.1} parent=55 // pred_fallthru
          _
        // Predicated region
        $region85: #{tpu_custom_call.1} parent=55 // pred_check
          %p429 = pneg %p198
        $region86: #{tpu_custom_call.1} parent=55 // pred_check_branch
          %431 = sbr.rel (%p429) target = $region88
        $region87: #{tpu_custom_call.1} parent=55 // pred_region
          %432 = dma.done [#allocation15], 256
        $region88: #{tpu_custom_call.1} parent=55 // pred_fallthru
          _
        // Predicated region
        $region89: #{tpu_custom_call.1} parent=55 // pred_check
          %p433 = pneg %p219
        $region90: #{tpu_custom_call.1} parent=55 // pred_check_branch
          %435 = sbr.rel (%p433) target = $region92
        $region91: #{tpu_custom_call.1} parent=55 // pred_region
          %436 = dma.done [#allocation15], 512
        $region92: #{tpu_custom_call.1} parent=55 // pred_fallthru
          _
        %s437 = sand.u32 %s38, 1
        %s438 = scalar_lea.sflag [#allocation3], %s437
        %s439 = sand.u32 %s38, 1
        %s440 = smul.addr %s439, 32
        %s441 = scalar_lea.vmem [#allocation2], %s440
        %p442 = pneg %p51
        %p443 = pneg %p48
        %p444 = pneg %p72
        %p445 = pneg %p69
        %p446 = pneg %p93
        %p447 = pneg %p90
        %p448 = pneg %p114
        %p449 = pneg %p111
        %p450 = pneg %p135
        %p451 = pneg %p132
        %p452 = pneg %p156
        %p453 = pneg %p153
        %p454 = pneg %p177
        %p455 = pneg %p174
        %p456 = pneg %p198
        %p457 = pneg %p195
        %p458 = pneg %p219
        %p459 = pneg %p216
        %p460 = pneg %p245
        %p461 = pneg %p242
        %s462 = sand.u32 %s232, 1
        %s463 = scalar_lea.sflag [#allocation4], %s462
        %s464 = sand.u32 %s232, 1
        %s465 = smul.addr %s464, 32
        %s466 = scalar_lea.vmem [#allocation17], %s465
        %v468 = vld [vmem:[%s400] sm:$0xff]
        %v469 = vld [vmem:[%s400 + $0x8] sm:$0xff]
        %v470 = vld [vmem:[%s400 + $0x10] sm:$0xff]
        %v471 = vld [vmem:[%s400 + $0x18] sm:$0xff]
        %v472 = vadd.f32 %v468, %v469
        %473 = vadd.xlane.f32.xlu0 %v472
        %v474 = vpop.xlane.xlu0 %473
        %v475 = vadd.f32 %v470, %v471
        %476 = vadd.xlane.f32.xlu0 %v475
        %v477 = vpop.xlane.xlu0 %476
        %v478 = vmul.f32 %v468, %v468
        %v479 = vmul.f32 %v469, %v469
        %v480 = vmul.f32 %v470, %v470
        %v481 = vmul.f32 %v471, %v471
        %v482 = vadd.f32 %v478, %v479
        %483 = vadd.xlane.f32.xlu0 %v482
        %v484 = vpop.xlane.xlu0 %483
        %v485 = vadd.f32 %v480, %v481
        %486 = vadd.xlane.f32.xlu0 %v485
        %v487 = vpop.xlane.xlu0 %486
        %vm488 = vcmask 7168
        %v489 = vsel %vm488, %v474, %v484
        %v490 = vsel %vm488, %v477, %v487
        %v491 = vld [vmem:[#allocation14] sm:$0xff]
        %v492 = vld [vmem:[#allocation14 + $0x8] sm:$0xff]
        %vm493 = vcmask 130048
        %v495 = vsel %vm493, %v491, 0
        %v498 = vsel %vm493, %v492, 0
        %500 = vmatprep.subr.mxu0 0.0
        %501 = vmatpush1.msra.mxu0 %v489
        %502 = vmatprep.subr.mxu0 0.0
        %503 = vmatpush1.msra.mxu0 %v490
        %504 = vmatprep.subr.mxu0 0.0
        %505 = vmatpush1.msra.mxu0 0.0
        %506 = vmatprep.subr.mxu0 0.0
        %507 = vmatpush1.msra.mxu0 0.0
        %508 = vmatprep.subr.mxu0 0.0
        %509 = vmatpush1.msra.mxu0 0.0
        %510 = vmatprep.subr.mxu0 0.0
        %511 = vmatpush1.msra.mxu0 0.0
        %512 = vmatprep.subr.mxu0 0.0
        %513 = vmatpush1.msra.mxu0 0.0
        %514 = vmatprep.subr.mxu0 0.0
        %515 = vmatpush1.msra.mxu0 0.0
        %516 = vmatprep.subr.mxu0 0.0
        %517 = vmatpush1.msra.mxu0 0.0
        %518 = vmatprep.subr.mxu0 0.0
        %519 = vmatpush1.msra.mxu0 0.0
        %520 = vmatprep.subr.mxu0 0.0
        %521 = vmatpush1.msra.mxu0 0.0
        %522 = vmatprep.subr.mxu0 0.0
        %523 = vmatpush1.msra.mxu0 0.0
        %524 = vmatprep.subr.mxu0 0.0
        %525 = vmatpush1.msra.mxu0 0.0
        %526 = vmatprep.subr.mxu0 0.0
        %527 = vmatpush1.msra.mxu0 0.0
        %528 = vmatprep.subr.mxu0 0.0
        %529 = vmatpush1.msra.mxu0 0.0
        %530 = vmatprep.subr.mxu0 0.0
        %531 = vmatpush1.msra.mxu0 0.0
        %532 = vmatprep.subr.mxu0 0.0
        %533 = vmatpush1.msra.mxu0 0.0
        %534 = vmatprep.subr.mxu0 0.0
        %535 = vmatpush1.msra.mxu0 0.0
        %536 = vmatprep.subr.mxu0 0.0
        %537 = vmatpush1.msra.mxu0 0.0
        %538 = vmatprep.subr.mxu0 0.0
        %539 = vmatpush1.msra.mxu0 0.0
        %540 = vmatprep.subr.mxu0 0.0
        %541 = vmatpush1.msra.mxu0 0.0
        %542 = vmatprep.subr.mxu0 0.0
        %543 = vmatpush1.msra.mxu0 0.0
        %544 = vmatprep.subr.mxu0 0.0
        %545 = vmatpush1.msra.mxu0 0.0
        %546 = vmatprep.subr.mxu0 0.0
        %547 = vmatpush1.msra.mxu0 0.0
        %548 = vmatprep.subr.mxu0 0.0
        %549 = vmatpush1.msra.mxu0 0.0
        %550 = vmatprep.subr.mxu0 0.0
        %551 = vmatpush1.msra.mxu0 0.0
        %552 = vmatprep.subr.mxu0 0.0
        %553 = vmatpush1.msra.mxu0 0.0
        %554 = vmatprep.subr.mxu0 0.0
        %555 = vmatpush1.msra.mxu0 0.0
        %556 = vmatprep.subr.mxu0 0.0
        %557 = vmatpush1.msra.mxu0 0.0
        %558 = vmatprep.subr.mxu0 0.0
        %559 = vmatpush1.msra.mxu0 0.0
        %560 = vmatprep.subr.mxu0 0.0
        %561 = vmatpush1.msra.mxu0 0.0
        %562 = vmatprep.subr.mxu0 0.0
        %563 = vmatpush1.msra.mxu0 0.0
        %564 = vmatprep.mubr.f32.mxu0 0.0
        %565 = vmatmul.mubr.f32.gmra.mrb[0].mxu0 %v495
        %v566 = vpop.f32.mrb[0].mxu0
        %v567 = vadd.f32 0.0, %v566
        %v568 = vpop.f32.mrb[0].mxu0
        %569 = vmatprep.mubr.f32.mxu0 0.0
        %570 = vmatmul.mubr.f32.gmra.mrb[0].mxu0 %v498
        %v571 = vpop.f32.mrb[0].mxu0
        %v572 = vadd.f32 0.0, %v571
        %v573 = vpop.f32.mrb[0].mxu0
        %574 = vdwg.mxu0
        %v575 = vmul.f32 %v567, %v567
        %v576 = vmul.f32 %v572, %v572
        %579 = vrot.lane.b32.xlu0 %v575, 1
        %v580 = vpop.permute.xlu0 %579
        %581 = vrot.lane.b32.xlu0 %v576, 1
        %v582 = vpop.permute.xlu0 %581
        %v585 = vsub.f32 %v567, %v580
        %v586 = vsub.f32 %v572, %v582
        %v587 = vmax.f32 %v585, 0.0
        %v588 = vmax.f32 %v586, 0.0
        %v589 = vadd.f32 %v587, 1e-05
        %v590 = vadd.f32 %v588, 1e-05
        %v591 = vrsqrt.pop %v589
        %v592 = vrsqrt.pop %v590
        %594 = vset.pattern.permute.xlu0 0
        %595 = vperm.xlu0 %594, %v567
        %v596 = vpop.permute.xlu0 %595
        %599 = vset.pattern.permute.xlu0 0
        %600 = vperm.xlu0 %599, %v572
        %v601 = vpop.permute.xlu0 %600
        %v603 = vsub.f32 %v468, %v596
        %v604 = vsub.f32 %v469, %v596
        %v605 = vsub.f32 %v470, %v601
        %v606 = vsub.f32 %v471, %v601
        %608 = vset.pattern.permute.xlu0 1
        %609 = vperm.xlu0 %608, %v591
        %v610 = vpop.permute.xlu0 %609
        %613 = vset.pattern.permute.xlu0 1
        %614 = vperm.xlu0 %613, %v592
        %v615 = vpop.permute.xlu0 %614
        %v617 = vmul.f32 %v603, %v610
        %v618 = vmul.f32 %v604, %v610
        %v619 = vmul.f32 %v605, %v615
        %v620 = vmul.f32 %v606, %v615
        %v621 = vld [vmem:[#allocation8] sm:$0xff]
        %v622 = vld [vmem:[#allocation8 + $0x8] sm:$0xff]
        %624 = vset.pattern.permute.xlu0 0
        %625 = vperm.xlu0 %624, %v621
        %v626 = vpop.permute.xlu0 %625
        %629 = vset.pattern.permute.xlu0 0
        %630 = vperm.xlu0 %629, %v622
        %v631 = vpop.permute.xlu0 %630
        %v633 = vmul.f32 %v617, %v626
        %v634 = vmul.f32 %v618, %v626
        %v635 = vmul.f32 %v619, %v631
        %v636 = vmul.f32 %v620, %v631
        %v637 = vld [vmem:[#allocation10] sm:$0xff]
        %v638 = vld [vmem:[#allocation10 + $0x8] sm:$0xff]
        %640 = vset.pattern.permute.xlu0 0
        %641 = vperm.xlu0 %640, %v637
        %v642 = vpop.permute.xlu0 %641
        %645 = vset.pattern.permute.xlu0 0
        %646 = vperm.xlu0 %645, %v638
        %v647 = vpop.permute.xlu0 %646
        %v649 = vadd.f32 %v633, %v642
        %v650 = vadd.f32 %v634, %v642
        %v651 = vadd.f32 %v635, %v647
        %v652 = vadd.f32 %v636, %v647
        %v653 = vmax.f32 %v649, 0.0
        %v654 = vmax.f32 %v650, 0.0
        %v655 = vmax.f32 %v651, 0.0
        %v656 = vmax.f32 %v652, 0.0
        %657 = vrot.lane.b32.xlu0 %v653, 17
        %v658 = vpop.permute.xlu0 %657
        %659 = vrot.lane.b32.xlu0 %v655, 17
        %v660 = vpop.permute.xlu0 %659
        %661 = vrot.lane.b32.xlu0 %v654, 17
        %v662 = vpop.permute.xlu0 %661
        %663 = vrot.lane.b32.xlu0 %v656, 17
        %v664 = vpop.permute.xlu0 %663
        %v665 = vlaneseq
        %v666 = vand.u32 %v665, 127
        %vm667 = vcmp.lt.s32.totalorder %v666, 17
        %v668 = vsel %vm667, %v658, %v662
        %v669 = vsel %vm667, %v660, %v664
        %v670 = vsel %vm667, %v662, %v658
        %v671 = vsel %vm667, %v664, %v660
        %v672 = vld [vmem:[#allocation16] ss:$8 sm:$0x3]
        %v674 = vlaneseq
        %v675 = vshrl.u32 %v674, 7
        %v676 = vsub.s32 0, %v675
        %v677 = vrot.slane %v672, %v676
        %v678 = vlaneseq
        %v679 = vshrl.u32 %v678, 7
        %v680 = vsub.s32 1, %v679
        %v681 = vrot.slane %v672, %v680
        %v684 = vmul.f32 %v670, %v677
        %v685 = vmul.f32 %v668, %v681
        %v686 = vmul.f32 %v671, %v677
        %v687 = vmul.f32 %v669, %v681
        %v688 = vld [vmem:[#allocation5] sm:$0xf]
        %v689 = vld [vmem:[#allocation5 + $0x4] sm:$0xf]
        %v690 = vpack.c.bf16 %v686, %v684
        %v691 = vpack.c.bf16 %v687, %v685
        %692 = vrot.lane.b32.xlu0 %v653, 16
        %v693 = vpop.permute.xlu0 %692
        %694 = vrot.lane.b32.xlu0 %v655, 16
        %v695 = vpop.permute.xlu0 %694
        %696 = vrot.lane.b32.xlu0 %v654, 16
        %v697 = vpop.permute.xlu0 %696
        %698 = vrot.lane.b32.xlu0 %v656, 16
        %v699 = vpop.permute.xlu0 %698
        %vm700 = vcmp.lt.s32.totalorder %v666, 16
        %v701 = vsel %vm700, %v693, %v697
        %v702 = vsel %vm700, %v695, %v699
        %v703 = vsel %vm700, %v697, %v693
        %v704 = vsel %vm700, %v699, %v695
        %s705 = scalar_lea.vmem [#allocation16], 1
        %v706 = vld [vmem:[%s705] ss:$8 sm:$0x3]
        %v708 = vlaneseq
        %v709 = vshrl.u32 %v708, 7
        %v710 = vsub.s32 0, %v709
        %v711 = vrot.slane %v706, %v710
        %v712 = vlaneseq
        %v713 = vshrl.u32 %v712, 7
        %v714 = vsub.s32 1, %v713
        %v715 = vrot.slane %v706, %v714
        %v718 = vmul.f32 %v703, %v711
        %v719 = vmul.f32 %v701, %v715
        %v720 = vmul.f32 %v704, %v711
        %v721 = vmul.f32 %v702, %v715
        %s722 = scalar_lea.vmem [#allocation5], 8
        %v723 = vld [vmem:[%s722] sm:$0xf]
        %v724 = vld [vmem:[%s722 + $0x4] sm:$0xf]
        %v725 = vpack.c.bf16 %v720, %v718
        %v726 = vpack.c.bf16 %v721, %v719
        %v729 = vunpack.c.l.b16 %v723
        %v730 = vunpack.c.l.b16 %v724
        %v731 = vpack.c.b16 %v730, %v729
        %v733 = vsel %vm493, %v731, 0
        %735 = vmatprep.subr.bf16.mxu0 %v726
        %736 = vmatpush1.bf16.msra.mxu0 %v725
        %737 = vmatprep.subr.bf16.mxu0 0
        %738 = vmatpush1.bf16.msra.mxu0 0
        %739 = vmatprep.subr.bf16.mxu0 0
        %740 = vmatpush1.bf16.msra.mxu0 0
        %741 = vmatprep.subr.bf16.mxu0 0
        %742 = vmatpush1.bf16.msra.mxu0 0
        %743 = vmatprep.subr.bf16.mxu0 0
        %744 = vmatpush1.bf16.msra.mxu0 0
        %745 = vmatprep.subr.bf16.mxu0 0
        %746 = vmatpush1.bf16.msra.mxu0 0
        %747 = vmatprep.subr.bf16.mxu0 0
        %748 = vmatpush1.bf16.msra.mxu0 0
        %749 = vmatprep.subr.bf16.mxu0 0
        %750 = vmatpush1.bf16.msra.mxu0 0
        %751 = vmatprep.subr.bf16.mxu0 0
        %752 = vmatpush1.bf16.msra.mxu0 0
        %753 = vmatprep.subr.bf16.mxu0 0
        %754 = vmatpush1.bf16.msra.mxu0 0
        %755 = vmatprep.subr.bf16.mxu0 0
        %756 = vmatpush1.bf16.msra.mxu0 0
        %757 = vmatprep.subr.bf16.mxu0 0
        %758 = vmatpush1.bf16.msra.mxu0 0
        %759 = vmatprep.subr.bf16.mxu0 0
        %760 = vmatpush1.bf16.msra.mxu0 0
        %761 = vmatprep.subr.bf16.mxu0 0
        %762 = vmatpush1.bf16.msra.mxu0 0
        %763 = vmatprep.subr.bf16.mxu0 0
        %764 = vmatpush1.bf16.msra.mxu0 0
        %765 = vmatprep.subr.bf16.mxu0 0
        %766 = vmatpush1.bf16.msra.mxu0 0
        %767 = vmatprep.mubr.bf16.mxu0 0
        %768 = vmatmul.mubr.bf16.gmra.mrb[0].mxu0 %v733
        %v769 = vpop.f32.mrb[0].mxu0
        %v770 = vadd.f32 0.0, %v769
        %v771 = vpop.f32.mrb[0].mxu0
        %v772 = vadd.f32 0.0, %v771
        %v773 = vpop.f32.mrb[0].mxu0
        %v774 = vadd.f32 0.0, %v773
        %v775 = vpop.f32.mrb[0].mxu0
        %v776 = vadd.f32 0.0, %v775
        %777 = vdwg.mxu0
        %v780 = vunpack.c.l.b16 %v688
        %v781 = vunpack.c.l.b16 %v689
        %v782 = vpack.c.b16 %v781, %v780
        %v784 = vsel %vm493, %v782, 0
        %786 = vmatprep.subr.bf16.mxu0 %v691
        %787 = vmatpush1.bf16.msra.mxu0 %v690
        %788 = vmatprep.subr.bf16.mxu0 0
        %789 = vmatpush1.bf16.msra.mxu0 0
        %790 = vmatprep.subr.bf16.mxu0 0
        %791 = vmatpush1.bf16.msra.mxu0 0
        %792 = vmatprep.subr.bf16.mxu0 0
        %793 = vmatpush1.bf16.msra.mxu0 0
        %794 = vmatprep.subr.bf16.mxu0 0
        %795 = vmatpush1.bf16.msra.mxu0 0
        %796 = vmatprep.subr.bf16.mxu0 0
        %797 = vmatpush1.bf16.msra.mxu0 0
        %798 = vmatprep.subr.bf16.mxu0 0
        %799 = vmatpush1.bf16.msra.mxu0 0
        %800 = vmatprep.subr.bf16.mxu0 0
        %801 = vmatpush1.bf16.msra.mxu0 0
        %802 = vmatprep.subr.bf16.mxu0 0
        %803 = vmatpush1.bf16.msra.mxu0 0
        %804 = vmatprep.subr.bf16.mxu0 0
        %805 = vmatpush1.bf16.msra.mxu0 0
        %806 = vmatprep.subr.bf16.mxu0 0
        %807 = vmatpush1.bf16.msra.mxu0 0
        %808 = vmatprep.subr.bf16.mxu0 0
        %809 = vmatpush1.bf16.msra.mxu0 0
        %810 = vmatprep.subr.bf16.mxu0 0
        %811 = vmatpush1.bf16.msra.mxu0 0
        %812 = vmatprep.subr.bf16.mxu0 0
        %813 = vmatpush1.bf16.msra.mxu0 0
        %814 = vmatprep.subr.bf16.mxu0 0
        %815 = vmatpush1.bf16.msra.mxu0 0
        %816 = vmatprep.subr.bf16.mxu0 0
        %817 = vmatpush1.bf16.msra.mxu0 0
        %818 = vmatprep.mubr.bf16.mxu0 0
        %819 = vmatmul.mubr.bf16.gmra.mrb[0].mxu0 %v784
        %v820 = vpop.f32.mrb[0].mxu0
        %v821 = vadd.f32 %v770, %v820
        %v822 = vpop.f32.mrb[0].mxu0
        %v823 = vadd.f32 %v772, %v822
        %v824 = vpop.f32.mrb[0].mxu0
        %v825 = vadd.f32 %v774, %v824
        %v826 = vpop.f32.mrb[0].mxu0
        %v827 = vadd.f32 %v776, %v826
        %828 = vdwg.mxu0
        %829 = vrot.lane.b32.xlu0 %v653, 15
        %v830 = vpop.permute.xlu0 %829
        %831 = vrot.lane.b32.xlu0 %v655, 15
        %v832 = vpop.permute.xlu0 %831
        %833 = vrot.lane.b32.xlu0 %v654, 15
        %v834 = vpop.permute.xlu0 %833
        %835 = vrot.lane.b32.xlu0 %v656, 15
        %v836 = vpop.permute.xlu0 %835
        %vm837 = vcmp.lt.s32.totalorder %v666, 15
        %v838 = vsel %vm837, %v830, %v834
        %v839 = vsel %vm837, %v832, %v836
        %v840 = vsel %vm837, %v834, %v830
        %v841 = vsel %vm837, %v836, %v832
        %s842 = scalar_lea.vmem [#allocation16], 2
        %v843 = vld [vmem:[%s842] ss:$8 sm:$0x3]
        %v845 = vlaneseq
        %v846 = vshrl.u32 %v845, 7
        %v847 = vsub.s32 0, %v846
        %v848 = vrot.slane %v843, %v847
        %v849 = vlaneseq
        %v850 = vshrl.u32 %v849, 7
        %v851 = vsub.s32 1, %v850
        %v852 = vrot.slane %v843, %v851
        %v855 = vmul.f32 %v840, %v848
        %v856 = vmul.f32 %v838, %v852
        %v857 = vmul.f32 %v841, %v848
        %v858 = vmul.f32 %v839, %v852
        %s859 = scalar_lea.vmem [#allocation5], 16
        %v860 = vld [vmem:[%s859] sm:$0xf]
        %v861 = vld [vmem:[%s859 + $0x4] sm:$0xf]
        %v862 = vpack.c.bf16 %v857, %v855
        %v863 = vpack.c.bf16 %v858, %v856
        %v866 = vunpack.c.l.b16 %v860
        %v867 = vunpack.c.l.b16 %v861
        %v868 = vpack.c.b16 %v867, %v866
        %v870 = vsel %vm493, %v868, 0
        %872 = vmatprep.subr.bf16.mxu0 %v863
        %873 = vmatpush1.bf16.msra.mxu0 %v862
        %874 = vmatprep.subr.bf16.mxu0 0
        %875 = vmatpush1.bf16.msra.mxu0 0
        %876 = vmatprep.subr.bf16.mxu0 0
        %877 = vmatpush1.bf16.msra.mxu0 0
        %878 = vmatprep.subr.bf16.mxu0 0
        %879 = vmatpush1.bf16.msra.mxu0 0
        %880 = vmatprep.subr.bf16.mxu0 0
        %881 = vmatpush1.bf16.msra.mxu0 0
        %882 = vmatprep.subr.bf16.mxu0 0
        %883 = vmatpush1.bf16.msra.mxu0 0
        %884 = vmatprep.subr.bf16.mxu0 0
        %885 = vmatpush1.bf16.msra.mxu0 0
        %886 = vmatprep.subr.bf16.mxu0 0
        %887 = vmatpush1.bf16.msra.mxu0 0
        %888 = vmatprep.subr.bf16.mxu0 0
        %889 = vmatpush1.bf16.msra.mxu0 0
        %890 = vmatprep.subr.bf16.mxu0 0
        %891 = vmatpush1.bf16.msra.mxu0 0
        %892 = vmatprep.subr.bf16.mxu0 0
        %893 = vmatpush1.bf16.msra.mxu0 0
        %894 = vmatprep.subr.bf16.mxu0 0
        %895 = vmatpush1.bf16.msra.mxu0 0
        %896 = vmatprep.subr.bf16.mxu0 0
        %897 = vmatpush1.bf16.msra.mxu0 0
        %898 = vmatprep.subr.bf16.mxu0 0
        %899 = vmatpush1.bf16.msra.mxu0 0
        %900 = vmatprep.subr.bf16.mxu0 0
        %901 = vmatpush1.bf16.msra.mxu0 0
        %902 = vmatprep.subr.bf16.mxu0 0
        %903 = vmatpush1.bf16.msra.mxu0 0
        %904 = vmatprep.mubr.bf16.mxu0 0
        %905 = vmatmul.mubr.bf16.gmra.mrb[0].mxu0 %v870
        %v906 = vpop.f32.mrb[0].mxu0
        %v907 = vadd.f32 0.0, %v906
        %v908 = vpop.f32.mrb[0].mxu0
        %v909 = vadd.f32 0.0, %v908
        %v910 = vpop.f32.mrb[0].mxu0
        %v911 = vadd.f32 0.0, %v910
        %v912 = vpop.f32.mrb[0].mxu0
        %v913 = vadd.f32 0.0, %v912
        %914 = vdwg.mxu0
        %v915 = vadd.f32 %v821, %v907
        %v916 = vadd.f32 %v823, %v909
        %v917 = vadd.f32 %v825, %v911
        %v918 = vadd.f32 %v827, %v913
        %919 = vrot.lane.b32.xlu0 %v653, 1
        %v920 = vpop.permute.xlu0 %919
        %921 = vrot.lane.b32.xlu0 %v655, 1
        %v922 = vpop.permute.xlu0 %921
        %923 = vrot.lane.b32.xlu0 %v654, 1
        %v924 = vpop.permute.xlu0 %923
        %925 = vrot.lane.b32.xlu0 %v656, 1
        %v926 = vpop.permute.xlu0 %925
        %vm927 = vcmp.lt.s32.totalorder %v666, 1
        %v928 = vsel %vm927, %v920, %v924
        %v929 = vsel %vm927, %v922, %v926
        %v930 = vsel %vm927, %v924, %v920
        %v931 = vsel %vm927, %v926, %v922
        %s932 = scalar_lea.vmem [#allocation16], 3
        %v933 = vld [vmem:[%s932] ss:$8 sm:$0x3]
        %v935 = vlaneseq
        %v936 = vshrl.u32 %v935, 7
        %v937 = vsub.s32 0, %v936
        %v938 = vrot.slane %v933, %v937
        %v939 = vlaneseq
        %v940 = vshrl.u32 %v939, 7
        %v941 = vsub.s32 1, %v940
        %v942 = vrot.slane %v933, %v941
        %v945 = vmul.f32 %v930, %v938
        %v946 = vmul.f32 %v928, %v942
        %v947 = vmul.f32 %v931, %v938
        %v948 = vmul.f32 %v929, %v942
        %s949 = scalar_lea.vmem [#allocation5], 24
        %v950 = vld [vmem:[%s949] sm:$0xf]
        %v951 = vld [vmem:[%s949 + $0x4] sm:$0xf]
        %v952 = vpack.c.bf16 %v947, %v945
        %v953 = vpack.c.bf16 %v948, %v946
        %v956 = vunpack.c.l.b16 %v950
        %v957 = vunpack.c.l.b16 %v951
        %v958 = vpack.c.b16 %v957, %v956
        %v960 = vsel %vm493, %v958, 0
        %962 = vmatprep.subr.bf16.mxu0 %v953
        %963 = vmatpush1.bf16.msra.mxu0 %v952
        %964 = vmatprep.subr.bf16.mxu0 0
        %965 = vmatpush1.bf16.msra.mxu0 0
        %966 = vmatprep.subr.bf16.mxu0 0
        %967 = vmatpush1.bf16.msra.mxu0 0
        %968 = vmatprep.subr.bf16.mxu0 0
        %969 = vmatpush1.bf16.msra.mxu0 0
        %970 = vmatprep.subr.bf16.mxu0 0
        %971 = vmatpush1.bf16.msra.mxu0 0
        %972 = vmatprep.subr.bf16.mxu0 0
        %973 = vmatpush1.bf16.msra.mxu0 0
        %974 = vmatprep.subr.bf16.mxu0 0
        %975 = vmatpush1.bf16.msra.mxu0 0
        %976 = vmatprep.subr.bf16.mxu0 0
        %977 = vmatpush1.bf16.msra.mxu0 0
        %978 = vmatprep.subr.bf16.mxu0 0
        %979 = vmatpush1.bf16.msra.mxu0 0
        %980 = vmatprep.subr.bf16.mxu0 0
        %981 = vmatpush1.bf16.msra.mxu0 0
        %982 = vmatprep.subr.bf16.mxu0 0
        %983 = vmatpush1.bf16.msra.mxu0 0
        %984 = vmatprep.subr.bf16.mxu0 0
        %985 = vmatpush1.bf16.msra.mxu0 0
        %986 = vmatprep.subr.bf16.mxu0 0
        %987 = vmatpush1.bf16.msra.mxu0 0
        %988 = vmatprep.subr.bf16.mxu0 0
        %989 = vmatpush1.bf16.msra.mxu0 0
        %990 = vmatprep.subr.bf16.mxu0 0
        %991 = vmatpush1.bf16.msra.mxu0 0
        %992 = vmatprep.subr.bf16.mxu0 0
        %993 = vmatpush1.bf16.msra.mxu0 0
        %994 = vmatprep.mubr.bf16.mxu0 0
        %995 = vmatmul.mubr.bf16.gmra.mrb[0].mxu0 %v960
        %v996 = vpop.f32.mrb[0].mxu0
        %v997 = vadd.f32 0.0, %v996
        %v998 = vpop.f32.mrb[0].mxu0
        %v999 = vadd.f32 0.0, %v998
        %v1000 = vpop.f32.mrb[0].mxu0
        %v1001 = vadd.f32 0.0, %v1000
        %v1002 = vpop.f32.mrb[0].mxu0
        %v1003 = vadd.f32 0.0, %v1002
        %1004 = vdwg.mxu0
        %v1005 = vadd.f32 %v915, %v997
        %v1006 = vadd.f32 %v916, %v999
        %v1007 = vadd.f32 %v917, %v1001
        %v1008 = vadd.f32 %v918, %v1003
        %s1009 = scalar_lea.vmem [#allocation5], 32
        %v1010 = vld [vmem:[%s1009] sm:$0xf]
        %v1011 = vld [vmem:[%s1009 + $0x4] sm:$0xf]
        %v1012 = vpack.c.bf16 %v655, %v653
        %v1013 = vpack.c.bf16 %v656, %v654
        %v1016 = vunpack.c.l.b16 %v1010
        %v1017 = vunpack.c.l.b16 %v1011
        %v1018 = vpack.c.b16 %v1017, %v1016
        %v1020 = vsel %vm493, %v1018, 0
        %1022 = vmatprep.subr.bf16.mxu0 %v1013
        %1023 = vmatpush1.bf16.msra.mxu0 %v1012
        %1024 = vmatprep.subr.bf16.mxu0 0
        %1025 = vmatpush1.bf16.msra.mxu0 0
        %1026 = vmatprep.subr.bf16.mxu0 0
        %1027 = vmatpush1.bf16.msra.mxu0 0
        %1028 = vmatprep.subr.bf16.mxu0 0
        %1029 = vmatpush1.bf16.msra.mxu0 0
        %1030 = vmatprep.subr.bf16.mxu0 0
        %1031 = vmatpush1.bf16.msra.mxu0 0
        %1032 = vmatprep.subr.bf16.mxu0 0
        %1033 = vmatpush1.bf16.msra.mxu0 0
        %1034 = vmatprep.subr.bf16.mxu0 0
        %1035 = vmatpush1.bf16.msra.mxu0 0
        %1036 = vmatprep.subr.bf16.mxu0 0
        %1037 = vmatpush1.bf16.msra.mxu0 0
        %1038 = vmatprep.subr.bf16.mxu0 0
        %1039 = vmatpush1.bf16.msra.mxu0 0
        %1040 = vmatprep.subr.bf16.mxu0 0
        %1041 = vmatpush1.bf16.msra.mxu0 0
        %1042 = vmatprep.subr.bf16.mxu0 0
        %1043 = vmatpush1.bf16.msra.mxu0 0
        %1044 = vmatprep.subr.bf16.mxu0 0
        %1045 = vmatpush1.bf16.msra.mxu0 0
        %1046 = vmatprep.subr.bf16.mxu0 0
        %1047 = vmatpush1.bf16.msra.mxu0 0
        %1048 = vmatprep.subr.bf16.mxu0 0
        %1049 = vmatpush1.bf16.msra.mxu0 0
        %1050 = vmatprep.subr.bf16.mxu0 0
        %1051 = vmatpush1.bf16.msra.mxu0 0
        %1052 = vmatprep.subr.bf16.mxu0 0
        %1053 = vmatpush1.bf16.msra.mxu0 0
        %1054 = vmatprep.mubr.bf16.mxu0 0
        %1055 = vmatmul.mubr.bf16.gmra.mrb[0].mxu0 %v1020
        %v1056 = vpop.f32.mrb[0].mxu0
        %v1057 = vadd.f32 0.0, %v1056
        %v1058 = vpop.f32.mrb[0].mxu0
        %v1059 = vadd.f32 0.0, %v1058
        %v1060 = vpop.f32.mrb[0].mxu0
        %v1061 = vadd.f32 0.0, %v1060
        %v1062 = vpop.f32.mrb[0].mxu0
        %v1063 = vadd.f32 0.0, %v1062
        %1064 = vdwg.mxu0
        %v1065 = vadd.f32 %v1005, %v1057
        %v1066 = vadd.f32 %v1006, %v1059
        %v1067 = vadd.f32 %v1007, %v1061
        %v1068 = vadd.f32 %v1008, %v1063
        %1069 = vrot.lane.b32.xlu0 %v653, 127
        %v1070 = vpop.permute.xlu0 %1069
        %1071 = vrot.lane.b32.xlu0 %v655, 127
        %v1072 = vpop.permute.xlu0 %1071
        %1073 = vrot.lane.b32.xlu0 %v654, 127
        %v1074 = vpop.permute.xlu0 %1073
        %1075 = vrot.lane.b32.xlu0 %v656, 127
        %v1076 = vpop.permute.xlu0 %1075
        %vm1077 = vcmp.lt.s32.totalorder %v666, 127
        %v1078 = vsel %vm1077, %v1070, %v1074
        %v1079 = vsel %vm1077, %v1072, %v1076
        %v1080 = vsel %vm1077, %v1074, %v1070
        %v1081 = vsel %vm1077, %v1076, %v1072
        %s1082 = scalar_lea.vmem [#allocation16], 5
        %v1083 = vld [vmem:[%s1082] ss:$8 sm:$0x3]
        %v1085 = vlaneseq
        %v1086 = vshrl.u32 %v1085, 7
        %v1087 = vsub.s32 0, %v1086
        %v1088 = vrot.slane %v1083, %v1087
        %v1089 = vlaneseq
        %v1090 = vshrl.u32 %v1089, 7
        %v1091 = vsub.s32 1, %v1090
        %v1092 = vrot.slane %v1083, %v1091
        %v1095 = vmul.f32 %v1078, %v1088
        %v1096 = vmul.f32 %v1080, %v1092
        %v1097 = vmul.f32 %v1079, %v1088
        %v1098 = vmul.f32 %v1081, %v1092
        %s1099 = scalar_lea.vmem [#allocation5], 40
        %v1100 = vld [vmem:[%s1099] sm:$0xf]
        %v1101 = vld [vmem:[%s1099 + $0x4] sm:$0xf]
        %v1102 = vpack.c.bf16 %v1097, %v1095
        %v1103 = vpack.c.bf16 %v1098, %v1096
        %v1106 = vunpack.c.l.b16 %v1100
        %v1107 = vunpack.c.l.b16 %v1101
        %v1108 = vpack.c.b16 %v1107, %v1106
        %v1110 = vsel %vm493, %v1108, 0
        %1112 = vmatprep.subr.bf16.mxu0 %v1103
        %1113 = vmatpush1.bf16.msra.mxu0 %v1102
        %1114 = vmatprep.subr.bf16.mxu0 0
        %1115 = vmatpush1.bf16.msra.mxu0 0
        %1116 = vmatprep.subr.bf16.mxu0 0
        %1117 = vmatpush1.bf16.msra.mxu0 0
        %1118 = vmatprep.subr.bf16.mxu0 0
        %1119 = vmatpush1.bf16.msra.mxu0 0
        %1120 = vmatprep.subr.bf16.mxu0 0
        %1121 = vmatpush1.bf16.msra.mxu0 0
        %1122 = vmatprep.subr.bf16.mxu0 0
        %1123 = vmatpush1.bf16.msra.mxu0 0
        %1124 = vmatprep.subr.bf16.mxu0 0
        %1125 = vmatpush1.bf16.msra.mxu0 0
        %1126 = vmatprep.subr.bf16.mxu0 0
        %1127 = vmatpush1.bf16.msra.mxu0 0
        %1128 = vmatprep.subr.bf16.mxu0 0
        %1129 = vmatpush1.bf16.msra.mxu0 0
        %1130 = vmatprep.subr.bf16.mxu0 0
        %1131 = vmatpush1.bf16.msra.mxu0 0
        %1132 = vmatprep.subr.bf16.mxu0 0
        %1133 = vmatpush1.bf16.msra.mxu0 0
        %1134 = vmatprep.subr.bf16.mxu0 0
        %1135 = vmatpush1.bf16.msra.mxu0 0
        %1136 = vmatprep.subr.bf16.mxu0 0
        %1137 = vmatpush1.bf16.msra.mxu0 0
        %1138 = vmatprep.subr.bf16.mxu0 0
        %1139 = vmatpush1.bf16.msra.mxu0 0
        %1140 = vmatprep.subr.bf16.mxu0 0
        %1141 = vmatpush1.bf16.msra.mxu0 0
        %1142 = vmatprep.subr.bf16.mxu0 0
        %1143 = vmatpush1.bf16.msra.mxu0 0
        %1144 = vmatprep.mubr.bf16.mxu0 0
        %1145 = vmatmul.mubr.bf16.gmra.mrb[0].mxu0 %v1110
        %v1146 = vpop.f32.mrb[0].mxu0
        %v1147 = vadd.f32 0.0, %v1146
        %v1148 = vpop.f32.mrb[0].mxu0
        %v1149 = vadd.f32 0.0, %v1148
        %v1150 = vpop.f32.mrb[0].mxu0
        %v1151 = vadd.f32 0.0, %v1150
        %v1152 = vpop.f32.mrb[0].mxu0
        %v1153 = vadd.f32 0.0, %v1152
        %1154 = vdwg.mxu0
        %v1155 = vadd.f32 %v1065, %v1147
        %v1156 = vadd.f32 %v1066, %v1149
        %v1157 = vadd.f32 %v1067, %v1151
        %v1158 = vadd.f32 %v1068, %v1153
        %1159 = vrot.lane.b32.xlu0 %v653, 113
        %v1160 = vpop.permute.xlu0 %1159
        %1161 = vrot.lane.b32.xlu0 %v655, 113
        %v1162 = vpop.permute.xlu0 %1161
        %1163 = vrot.lane.b32.xlu0 %v654, 113
        %v1164 = vpop.permute.xlu0 %1163
        %1165 = vrot.lane.b32.xlu0 %v656, 113
        %v1166 = vpop.permute.xlu0 %1165
        %vm1167 = vcmp.lt.s32.totalorder %v666, 113
        %v1168 = vsel %vm1167, %v1160, %v1164
        %v1169 = vsel %vm1167, %v1162, %v1166
        %v1170 = vsel %vm1167, %v1164, %v1160
        %v1171 = vsel %vm1167, %v1166, %v1162
        %s1172 = scalar_lea.vmem [#allocation16], 6
        %v1173 = vld [vmem:[%s1172] ss:$8 sm:$0x3]
        %v1175 = vlaneseq
        %v1176 = vshrl.u32 %v1175, 7
        %v1177 = vsub.s32 0, %v1176
        %v1178 = vrot.slane %v1173, %v1177
        %v1179 = vlaneseq
        %v1180 = vshrl.u32 %v1179, 7
        %v1181 = vsub.s32 1, %v1180
        %v1182 = vrot.slane %v1173, %v1181
        %v1185 = vmul.f32 %v1168, %v1178
        %v1186 = vmul.f32 %v1170, %v1182
        %v1187 = vmul.f32 %v1169, %v1178
        %v1188 = vmul.f32 %v1171, %v1182
        %s1189 = scalar_lea.vmem [#allocation5], 48
        %v1190 = vld [vmem:[%s1189] sm:$0xf]
        %v1191 = vld [vmem:[%s1189 + $0x4] sm:$0xf]
        %v1192 = vpack.c.bf16 %v1187, %v1185
        %v1193 = vpack.c.bf16 %v1188, %v1186
        %v1196 = vunpack.c.l.b16 %v1190
        %v1197 = vunpack.c.l.b16 %v1191
        %v1198 = vpack.c.b16 %v1197, %v1196
        %v1200 = vsel %vm493, %v1198, 0
        %1202 = vmatprep.subr.bf16.mxu0 %v1193
        %1203 = vmatpush1.bf16.msra.mxu0 %v1192
        %1204 = vmatprep.subr.bf16.mxu0 0
        %1205 = vmatpush1.bf16.msra.mxu0 0
        %1206 = vmatprep.subr.bf16.mxu0 0
        %1207 = vmatpush1.bf16.msra.mxu0 0
        %1208 = vmatprep.subr.bf16.mxu0 0
        %1209 = vmatpush1.bf16.msra.mxu0 0
        %1210 = vmatprep.subr.bf16.mxu0 0
        %1211 = vmatpush1.bf16.msra.mxu0 0
        %1212 = vmatprep.subr.bf16.mxu0 0
        %1213 = vmatpush1.bf16.msra.mxu0 0
        %1214 = vmatprep.subr.bf16.mxu0 0
        %1215 = vmatpush1.bf16.msra.mxu0 0
        %1216 = vmatprep.subr.bf16.mxu0 0
        %1217 = vmatpush1.bf16.msra.mxu0 0
        %1218 = vmatprep.subr.bf16.mxu0 0
        %1219 = vmatpush1.bf16.msra.mxu0 0
        %1220 = vmatprep.subr.bf16.mxu0 0
        %1221 = vmatpush1.bf16.msra.mxu0 0
        %1222 = vmatprep.subr.bf16.mxu0 0
        %1223 = vmatpush1.bf16.msra.mxu0 0
        %1224 = vmatprep.subr.bf16.mxu0 0
        %1225 = vmatpush1.bf16.msra.mxu0 0
        %1226 = vmatprep.subr.bf16.mxu0 0
        %1227 = vmatpush1.bf16.msra.mxu0 0
        %1228 = vmatprep.subr.bf16.mxu0 0
        %1229 = vmatpush1.bf16.msra.mxu0 0
        %1230 = vmatprep.subr.bf16.mxu0 0
        %1231 = vmatpush1.bf16.msra.mxu0 0
        %1232 = vmatprep.subr.bf16.mxu0 0
        %1233 = vmatpush1.bf16.msra.mxu0 0
        %1234 = vmatprep.mubr.bf16.mxu0 0
        %1235 = vmatmul.mubr.bf16.gmra.mrb[0].mxu0 %v1200
        %v1236 = vpop.f32.mrb[0].mxu0
        %v1237 = vadd.f32 0.0, %v1236
        %v1238 = vpop.f32.mrb[0].mxu0
        %v1239 = vadd.f32 0.0, %v1238
        %v1240 = vpop.f32.mrb[0].mxu0
        %v1241 = vadd.f32 0.0, %v1240
        %v1242 = vpop.f32.mrb[0].mxu0
        %v1243 = vadd.f32 0.0, %v1242
        %1244 = vdwg.mxu0
        %v1245 = vadd.f32 %v1155, %v1237
        %v1246 = vadd.f32 %v1156, %v1239
        %v1247 = vadd.f32 %v1157, %v1241
        %v1248 = vadd.f32 %v1158, %v1243
        %1249 = vrot.lane.b32.xlu0 %v653, 112
        %v1250 = vpop.permute.xlu0 %1249
        %1251 = vrot.lane.b32.xlu0 %v655, 112
        %v1252 = vpop.permute.xlu0 %1251
        %1253 = vrot.lane.b32.xlu0 %v654, 112
        %v1254 = vpop.permute.xlu0 %1253
        %1255 = vrot.lane.b32.xlu0 %v656, 112
        %v1256 = vpop.permute.xlu0 %1255
        %vm1257 = vcmp.lt.s32.totalorder %v666, 112
        %v1258 = vsel %vm1257, %v1250, %v1254
        %v1259 = vsel %vm1257, %v1252, %v1256
        %v1260 = vsel %vm1257, %v1254, %v1250
        %v1261 = vsel %vm1257, %v1256, %v1252
        %s1262 = scalar_lea.vmem [#allocation16], 7
        %v1263 = vld [vmem:[%s1262] ss:$8 sm:$0x3]
        %v1265 = vlaneseq
        %v1266 = vshrl.u32 %v1265, 7
        %v1267 = vsub.s32 0, %v1266
        %v1268 = vrot.slane %v1263, %v1267
        %v1269 = vlaneseq
        %v1270 = vshrl.u32 %v1269, 7
        %v1271 = vsub.s32 1, %v1270
        %v1272 = vrot.slane %v1263, %v1271
        %v1275 = vmul.f32 %v1258, %v1268
        %v1276 = vmul.f32 %v1260, %v1272
        %v1277 = vmul.f32 %v1259, %v1268
        %v1278 = vmul.f32 %v1261, %v1272
        %s1279 = scalar_lea.vmem [#allocation5], 56
        %v1280 = vld [vmem:[%s1279] sm:$0xf]
        %v1281 = vld [vmem:[%s1279 + $0x4] sm:$0xf]
        %v1282 = vpack.c.bf16 %v1277, %v1275
        %v1283 = vpack.c.bf16 %v1278, %v1276
        %v1286 = vunpack.c.l.b16 %v1280
        %v1287 = vunpack.c.l.b16 %v1281
        %v1288 = vpack.c.b16 %v1287, %v1286
        %v1290 = vsel %vm493, %v1288, 0
        %1292 = vmatprep.subr.bf16.mxu0 %v1283
        %1293 = vmatpush1.bf16.msra.mxu0 %v1282
        %1294 = vmatprep.subr.bf16.mxu0 0
        %1295 = vmatpush1.bf16.msra.mxu0 0
        %1296 = vmatprep.subr.bf16.mxu0 0
        %1297 = vmatpush1.bf16.msra.mxu0 0
        %1298 = vmatprep.subr.bf16.mxu0 0
        %1299 = vmatpush1.bf16.msra.mxu0 0
        %1300 = vmatprep.subr.bf16.mxu0 0
        %1301 = vmatpush1.bf16.msra.mxu0 0
        %1302 = vmatprep.subr.bf16.mxu0 0
        %1303 = vmatpush1.bf16.msra.mxu0 0
        %1304 = vmatprep.subr.bf16.mxu0 0
        %1305 = vmatpush1.bf16.msra.mxu0 0
        %1306 = vmatprep.subr.bf16.mxu0 0
        %1307 = vmatpush1.bf16.msra.mxu0 0
        %1308 = vmatprep.subr.bf16.mxu0 0
        %1309 = vmatpush1.bf16.msra.mxu0 0
        %1310 = vmatprep.subr.bf16.mxu0 0
        %1311 = vmatpush1.bf16.msra.mxu0 0
        %1312 = vmatprep.subr.bf16.mxu0 0
        %1313 = vmatpush1.bf16.msra.mxu0 0
        %1314 = vmatprep.subr.bf16.mxu0 0
        %1315 = vmatpush1.bf16.msra.mxu0 0
        %1316 = vmatprep.subr.bf16.mxu0 0
        %1317 = vmatpush1.bf16.msra.mxu0 0
        %1318 = vmatprep.subr.bf16.mxu0 0
        %1319 = vmatpush1.bf16.msra.mxu0 0
        %1320 = vmatprep.subr.bf16.mxu0 0
        %1321 = vmatpush1.bf16.msra.mxu0 0
        %1322 = vmatprep.subr.bf16.mxu0 0
        %1323 = vmatpush1.bf16.msra.mxu0 0
        %1324 = vmatprep.mubr.bf16.mxu0 0
        %1325 = vmatmul.mubr.bf16.gmra.mrb[0].mxu0 %v1290
        %v1326 = vpop.f32.mrb[0].mxu0
        %v1327 = vadd.f32 0.0, %v1326
        %v1328 = vpop.f32.mrb[0].mxu0
        %v1329 = vadd.f32 0.0, %v1328
        %v1330 = vpop.f32.mrb[0].mxu0
        %v1331 = vadd.f32 0.0, %v1330
        %v1332 = vpop.f32.mrb[0].mxu0
        %v1333 = vadd.f32 0.0, %v1332
        %1334 = vdwg.mxu0
        %v1335 = vadd.f32 %v1245, %v1327
        %v1336 = vadd.f32 %v1246, %v1329
        %v1337 = vadd.f32 %v1247, %v1331
        %v1338 = vadd.f32 %v1248, %v1333
        %1339 = vrot.lane.b32.xlu0 %v653, 111
        %v1340 = vpop.permute.xlu0 %1339
        %1341 = vrot.lane.b32.xlu0 %v655, 111
        %v1342 = vpop.permute.xlu0 %1341
        %1343 = vrot.lane.b32.xlu0 %v654, 111
        %v1344 = vpop.permute.xlu0 %1343
        %1345 = vrot.lane.b32.xlu0 %v656, 111
        %v1346 = vpop.permute.xlu0 %1345
        %vm1347 = vcmp.lt.s32.totalorder %v666, 111
        %v1348 = vsel %vm1347, %v1340, %v1344
        %v1349 = vsel %vm1347, %v1342, %v1346
        %v1350 = vsel %vm1347, %v1344, %v1340
        %v1351 = vsel %vm1347, %v1346, %v1342
        %s1352 = scalar_lea.vmem [#allocation16], 16
        %v1353 = vld [vmem:[%s1352] ss:$8 sm:$0x3]
        %v1355 = vlaneseq
        %v1356 = vshrl.u32 %v1355, 7
        %v1357 = vsub.s32 0, %v1356
        %v1358 = vrot.slane %v1353, %v1357
        %v1359 = vlaneseq
        %v1360 = vshrl.u32 %v1359, 7
        %v1361 = vsub.s32 1, %v1360
        %v1362 = vrot.slane %v1353, %v1361
        %v1365 = vmul.f32 %v1348, %v1358
        %v1366 = vmul.f32 %v1350, %v1362
        %v1367 = vmul.f32 %v1349, %v1358
        %v1368 = vmul.f32 %v1351, %v1362
        %s1369 = scalar_lea.vmem [#allocation5], 64
        %v1370 = vld [vmem:[%s1369] sm:$0xf]
        %v1371 = vld [vmem:[%s1369 + $0x4] sm:$0xf]
        %v1372 = vpack.c.bf16 %v1367, %v1365
        %v1373 = vpack.c.bf16 %v1368, %v1366
        %v1376 = vunpack.c.l.b16 %v1370
        %v1377 = vunpack.c.l.b16 %v1371
        %v1378 = vpack.c.b16 %v1377, %v1376
        %v1380 = vsel %vm493, %v1378, 0
        %1382 = vmatprep.subr.bf16.mxu0 %v1373
        %1383 = vmatpush1.bf16.msra.mxu0 %v1372
        %1384 = vmatprep.subr.bf16.mxu0 0
        %1385 = vmatpush1.bf16.msra.mxu0 0
        %1386 = vmatprep.subr.bf16.mxu0 0
        %1387 = vmatpush1.bf16.msra.mxu0 0
        %1388 = vmatprep.subr.bf16.mxu0 0
        %1389 = vmatpush1.bf16.msra.mxu0 0
        %1390 = vmatprep.subr.bf16.mxu0 0
        %1391 = vmatpush1.bf16.msra.mxu0 0
        %1392 = vmatprep.subr.bf16.mxu0 0
        %1393 = vmatpush1.bf16.msra.mxu0 0
        %1394 = vmatprep.subr.bf16.mxu0 0
        %1395 = vmatpush1.bf16.msra.mxu0 0
        %1396 = vmatprep.subr.bf16.mxu0 0
        %1397 = vmatpush1.bf16.msra.mxu0 0
        %1398 = vmatprep.subr.bf16.mxu0 0
        %1399 = vmatpush1.bf16.msra.mxu0 0
        %1400 = vmatprep.subr.bf16.mxu0 0
        %1401 = vmatpush1.bf16.msra.mxu0 0
        %1402 = vmatprep.subr.bf16.mxu0 0
        %1403 = vmatpush1.bf16.msra.mxu0 0
        %1404 = vmatprep.subr.bf16.mxu0 0
        %1405 = vmatpush1.bf16.msra.mxu0 0
        %1406 = vmatprep.subr.bf16.mxu0 0
        %1407 = vmatpush1.bf16.msra.mxu0 0
        %1408 = vmatprep.subr.bf16.mxu0 0
        %1409 = vmatpush1.bf16.msra.mxu0 0
        %1410 = vmatprep.subr.bf16.mxu0 0
        %1411 = vmatpush1.bf16.msra.mxu0 0
        %1412 = vmatprep.subr.bf16.mxu0 0
        %1413 = vmatpush1.bf16.msra.mxu0 0
        %1414 = vmatprep.mubr.bf16.mxu0 0
        %1415 = vmatmul.mubr.bf16.gmra.mrb[0].mxu0 %v1380
        %v1416 = vpop.f32.mrb[0].mxu0
        %v1417 = vadd.f32 0.0, %v1416
        %v1418 = vpop.f32.mrb[0].mxu0
        %v1419 = vadd.f32 0.0, %v1418
        %v1420 = vpop.f32.mrb[0].mxu0
        %v1421 = vadd.f32 0.0, %v1420
        %v1422 = vpop.f32.mrb[0].mxu0
        %v1423 = vadd.f32 0.0, %v1422
        %1424 = vdwg.mxu0
        %v1425 = vadd.f32 %v1335, %v1417
        %v1426 = vadd.f32 %v1336, %v1419
        %v1427 = vadd.f32 %v1337, %v1421
        %v1428 = vadd.f32 %v1338, %v1423
        %v1429 = vadd.f32 %v1425, %v1426
        %1430 = vadd.xlane.f32.xlu0 %v1429
        %v1431 = vpop.xlane.xlu0 %1430
        %v1432 = vadd.f32 %v1427, %v1428
        %1433 = vadd.xlane.f32.xlu0 %v1432
        %v1434 = vpop.xlane.xlu0 %1433
        %v1435 = vmul.f32 %v1425, %v1425
        %v1436 = vmul.f32 %v1426, %v1426
        %v1437 = vmul.f32 %v1427, %v1427
        %v1438 = vmul.f32 %v1428, %v1428
        %v1439 = vadd.f32 %v1435, %v1436
        %1440 = vadd.xlane.f32.xlu0 %v1439
        %v1441 = vpop.xlane.xlu0 %1440
        %v1442 = vadd.f32 %v1437, %v1438
        %1443 = vadd.xlane.f32.xlu0 %v1442
        %v1444 = vpop.xlane.xlu0 %1443
        %v1445 = vsel %vm488, %v1431, %v1441
        %v1446 = vsel %vm488, %v1434, %v1444
        %1447 = vmatprep.subr.mxu0 0.0
        %1448 = vmatpush1.msra.mxu0 %v1445
        %1449 = vmatprep.subr.mxu0 0.0
        %1450 = vmatpush1.msra.mxu0 %v1446
        %1451 = vmatprep.subr.mxu0 0.0
        %1452 = vmatpush1.msra.mxu0 0.0
        %1453 = vmatprep.subr.mxu0 0.0
        %1454 = vmatpush1.msra.mxu0 0.0
        %1455 = vmatprep.subr.mxu0 0.0
        %1456 = vmatpush1.msra.mxu0 0.0
        %1457 = vmatprep.subr.mxu0 0.0
        %1458 = vmatpush1.msra.mxu0 0.0
        %1459 = vmatprep.subr.mxu0 0.0
        %1460 = vmatpush1.msra.mxu0 0.0
        %1461 = vmatprep.subr.mxu0 0.0
        %1462 = vmatpush1.msra.mxu0 0.0
        %1463 = vmatprep.subr.mxu0 0.0
        %1464 = vmatpush1.msra.mxu0 0.0
        %1465 = vmatprep.subr.mxu0 0.0
        %1466 = vmatpush1.msra.mxu0 0.0
        %1467 = vmatprep.subr.mxu0 0.0
        %1468 = vmatpush1.msra.mxu0 0.0
        %1469 = vmatprep.subr.mxu0 0.0
        %1470 = vmatpush1.msra.mxu0 0.0
        %1471 = vmatprep.subr.mxu0 0.0
        %1472 = vmatpush1.msra.mxu0 0.0
        %1473 = vmatprep.subr.mxu0 0.0
        %1474 = vmatpush1.msra.mxu0 0.0
        %1475 = vmatprep.subr.mxu0 0.0
        %1476 = vmatpush1.msra.mxu0 0.0
        %1477 = vmatprep.subr.mxu0 0.0
        %1478 = vmatpush1.msra.mxu0 0.0
        %1479 = vmatprep.subr.mxu0 0.0
        %1480 = vmatpush1.msra.mxu0 0.0
        %1481 = vmatprep.subr.mxu0 0.0
        %1482 = vmatpush1.msra.mxu0 0.0
        %1483 = vmatprep.subr.mxu0 0.0
        %1484 = vmatpush1.msra.mxu0 0.0
        %1485 = vmatprep.subr.mxu0 0.0
        %1486 = vmatpush1.msra.mxu0 0.0
        %1487 = vmatprep.subr.mxu0 0.0
        %1488 = vmatpush1.msra.mxu0 0.0
        %1489 = vmatprep.subr.mxu0 0.0
        %1490 = vmatpush1.msra.mxu0 0.0
        %1491 = vmatprep.subr.mxu0 0.0
        %1492 = vmatpush1.msra.mxu0 0.0
        %1493 = vmatprep.subr.mxu0 0.0
        %1494 = vmatpush1.msra.mxu0 0.0
        %1495 = vmatprep.subr.mxu0 0.0
        %1496 = vmatpush1.msra.mxu0 0.0
        %1497 = vmatprep.subr.mxu0 0.0
        %1498 = vmatpush1.msra.mxu0 0.0
        %1499 = vmatprep.subr.mxu0 0.0
        %1500 = vmatpush1.msra.mxu0 0.0
        %1501 = vmatprep.subr.mxu0 0.0
        %1502 = vmatpush1.msra.mxu0 0.0
        %1503 = vmatprep.subr.mxu0 0.0
        %1504 = vmatpush1.msra.mxu0 0.0
        %1505 = vmatprep.subr.mxu0 0.0
        %1506 = vmatpush1.msra.mxu0 0.0
        %1507 = vmatprep.subr.mxu0 0.0
        %1508 = vmatpush1.msra.mxu0 0.0
        %1509 = vmatprep.subr.mxu0 0.0
        %1510 = vmatpush1.msra.mxu0 0.0
        %1511 = vmatprep.mubr.f32.mxu0 0.0
        %1512 = vmatmul.mubr.f32.gmra.mrb[0].mxu0 %v495
        %v1513 = vpop.f32.mrb[0].mxu0
        %v1514 = vadd.f32 0.0, %v1513
        %v1515 = vpop.f32.mrb[0].mxu0
        %1516 = vmatprep.mubr.f32.mxu0 0.0
        %1517 = vmatmul.mubr.f32.gmra.mrb[0].mxu0 %v498
        %v1518 = vpop.f32.mrb[0].mxu0
        %v1519 = vadd.f32 0.0, %v1518
        %v1520 = vpop.f32.mrb[0].mxu0
        %1521 = vdwg.mxu0
        %v1522 = vmul.f32 %v1514, %v1514
        %v1523 = vmul.f32 %v1519, %v1519
        %1526 = vrot.lane.b32.xlu0 %v1522, 1
        %v1527 = vpop.permute.xlu0 %1526
        %1528 = vrot.lane.b32.xlu0 %v1523, 1
        %v1529 = vpop.permute.xlu0 %1528
        %v1532 = vsub.f32 %v1514, %v1527
        %v1533 = vsub.f32 %v1519, %v1529
        %v1534 = vmax.f32 %v1532, 0.0
        %v1535 = vmax.f32 %v1533, 0.0
        %v1536 = vadd.f32 %v1534, 1e-05
        %v1537 = vadd.f32 %v1535, 1e-05
        %v1538 = vrsqrt.pop %v1536
        %v1539 = vrsqrt.pop %v1537
        %1541 = vset.pattern.permute.xlu0 0
        %1542 = vperm.xlu0 %1541, %v1514
        %v1543 = vpop.permute.xlu0 %1542
        %1546 = vset.pattern.permute.xlu0 0
        %1547 = vperm.xlu0 %1546, %v1519
        %v1548 = vpop.permute.xlu0 %1547
        %v1550 = vsub.f32 %v1425, %v1543
        %v1551 = vsub.f32 %v1426, %v1543
        %v1552 = vsub.f32 %v1427, %v1548
        %v1553 = vsub.f32 %v1428, %v1548
        %1555 = vset.pattern.permute.xlu0 1
        %1556 = vperm.xlu0 %1555, %v1538
        %v1557 = vpop.permute.xlu0 %1556
        %1560 = vset.pattern.permute.xlu0 1
        %1561 = vperm.xlu0 %1560, %v1539
        %v1562 = vpop.permute.xlu0 %1561
        %v1564 = vmul.f32 %v1550, %v1557
        %v1565 = vmul.f32 %v1551, %v1557
        %v1566 = vmul.f32 %v1552, %v1562
        %v1567 = vmul.f32 %v1553, %v1562
        %v1568 = vld [vmem:[#allocation11] sm:$0xff]
        %v1569 = vld [vmem:[#allocation11 + $0x8] sm:$0xff]
        %1571 = vset.pattern.permute.xlu0 0
        %1572 = vperm.xlu0 %1571, %v1568
        %v1573 = vpop.permute.xlu0 %1572
        %1576 = vset.pattern.permute.xlu0 0
        %1577 = vperm.xlu0 %1576, %v1569
        %v1578 = vpop.permute.xlu0 %1577
        %v1580 = vmul.f32 %v1564, %v1573
        %v1581 = vmul.f32 %v1565, %v1573
        %v1582 = vmul.f32 %v1566, %v1578
        %v1583 = vmul.f32 %v1567, %v1578
        %v1584 = vld [vmem:[#allocation13] sm:$0xff]
        %v1585 = vld [vmem:[#allocation13 + $0x8] sm:$0xff]
        %1587 = vset.pattern.permute.xlu0 0
        %1588 = vperm.xlu0 %1587, %v1584
        %v1589 = vpop.permute.xlu0 %1588
        %1592 = vset.pattern.permute.xlu0 0
        %1593 = vperm.xlu0 %1592, %v1585
        %v1594 = vpop.permute.xlu0 %1593
        %v1596 = vadd.f32 %v1580, %v1589
        %v1597 = vadd.f32 %v1581, %v1589
        %v1598 = vadd.f32 %v1582, %v1594
        %v1599 = vadd.f32 %v1583, %v1594
        %v1600 = vmax.f32 %v1596, 0.0
        %v1601 = vmax.f32 %v1597, 0.0
        %v1602 = vmax.f32 %v1598, 0.0
        %v1603 = vmax.f32 %v1599, 0.0
        %1604 = vrot.lane.b32.xlu0 %v1600, 17
        %v1605 = vpop.permute.xlu0 %1604
        %1606 = vrot.lane.b32.xlu0 %v1602, 17
        %v1607 = vpop.permute.xlu0 %1606
        %1608 = vrot.lane.b32.xlu0 %v1601, 17
        %v1609 = vpop.permute.xlu0 %1608
        %1610 = vrot.lane.b32.xlu0 %v1603, 17
        %v1611 = vpop.permute.xlu0 %1610
        %v1612 = vsel %vm667, %v1605, %v1609
        %v1613 = vsel %vm667, %v1607, %v1611
        %v1614 = vsel %vm667, %v1609, %v1605
        %v1615 = vsel %vm667, %v1611, %v1607
        %v1616 = vmul.f32 %v1614, %v677
        %v1617 = vmul.f32 %v1612, %v681
        %v1618 = vmul.f32 %v1615, %v677
        %v1619 = vmul.f32 %v1613, %v681
        %v1620 = vld [vmem:[#allocation7] sm:$0xf]
        %v1621 = vld [vmem:[#allocation7 + $0x4] sm:$0xf]
        %v1622 = vpack.c.bf16 %v1618, %v1616
        %v1623 = vpack.c.bf16 %v1619, %v1617
        %1624 = vrot.lane.b32.xlu0 %v1600, 16
        %v1625 = vpop.permute.xlu0 %1624
        %1626 = vrot.lane.b32.xlu0 %v1602, 16
        %v1627 = vpop.permute.xlu0 %1626
        %1628 = vrot.lane.b32.xlu0 %v1601, 16
        %v1629 = vpop.permute.xlu0 %1628
        %1630 = vrot.lane.b32.xlu0 %v1603, 16
        %v1631 = vpop.permute.xlu0 %1630
        %v1632 = vsel %vm700, %v1625, %v1629
        %v1633 = vsel %vm700, %v1627, %v1631
        %v1634 = vsel %vm700, %v1629, %v1625
        %v1635 = vsel %vm700, %v1631, %v1627
        %v1636 = vmul.f32 %v1634, %v711
        %v1637 = vmul.f32 %v1632, %v715
        %v1638 = vmul.f32 %v1635, %v711
        %v1639 = vmul.f32 %v1633, %v715
        %s1640 = scalar_lea.vmem [#allocation7], 8
        %v1641 = vld [vmem:[%s1640] sm:$0xf]
        %v1642 = vld [vmem:[%s1640 + $0x4] sm:$0xf]
        %v1643 = vpack.c.bf16 %v1638, %v1636
        %v1644 = vpack.c.bf16 %v1639, %v1637
        %v1647 = vunpack.c.l.b16 %v1641
        %v1648 = vunpack.c.l.b16 %v1642
        %v1649 = vpack.c.b16 %v1648, %v1647
        %v1651 = vsel %vm493, %v1649, 0
        %1653 = vmatprep.subr.bf16.mxu0 %v1644
        %1654 = vmatpush1.bf16.msra.mxu0 %v1643
        %1655 = vmatprep.subr.bf16.mxu0 0
        %1656 = vmatpush1.bf16.msra.mxu0 0
        %1657 = vmatprep.subr.bf16.mxu0 0
        %1658 = vmatpush1.bf16.msra.mxu0 0
        %1659 = vmatprep.subr.bf16.mxu0 0
        %1660 = vmatpush1.bf16.msra.mxu0 0
        %1661 = vmatprep.subr.bf16.mxu0 0
        %1662 = vmatpush1.bf16.msra.mxu0 0
        %1663 = vmatprep.subr.bf16.mxu0 0
        %1664 = vmatpush1.bf16.msra.mxu0 0
        %1665 = vmatprep.subr.bf16.mxu0 0
        %1666 = vmatpush1.bf16.msra.mxu0 0
        %1667 = vmatprep.subr.bf16.mxu0 0
        %1668 = vmatpush1.bf16.msra.mxu0 0
        %1669 = vmatprep.subr.bf16.mxu0 0
        %1670 = vmatpush1.bf16.msra.mxu0 0
        %1671 = vmatprep.subr.bf16.mxu0 0
        %1672 = vmatpush1.bf16.msra.mxu0 0
        %1673 = vmatprep.subr.bf16.mxu0 0
        %1674 = vmatpush1.bf16.msra.mxu0 0
        %1675 = vmatprep.subr.bf16.mxu0 0
        %1676 = vmatpush1.bf16.msra.mxu0 0
        %1677 = vmatprep.subr.bf16.mxu0 0
        %1678 = vmatpush1.bf16.msra.mxu0 0
        %1679 = vmatprep.subr.bf16.mxu0 0
        %1680 = vmatpush1.bf16.msra.mxu0 0
        %1681 = vmatprep.subr.bf16.mxu0 0
        %1682 = vmatpush1.bf16.msra.mxu0 0
        %1683 = vmatprep.subr.bf16.mxu0 0
        %1684 = vmatpush1.bf16.msra.mxu0 0
        %1685 = vmatprep.mubr.bf16.mxu0 0
        %1686 = vmatmul.mubr.bf16.gmra.mrb[0].mxu0 %v1651
        %v1687 = vpop.f32.mrb[0].mxu0
        %v1688 = vadd.f32 0.0, %v1687
        %v1689 = vpop.f32.mrb[0].mxu0
        %v1690 = vadd.f32 0.0, %v1689
        %v1691 = vpop.f32.mrb[0].mxu0
        %v1692 = vadd.f32 0.0, %v1691
        %v1693 = vpop.f32.mrb[0].mxu0
        %v1694 = vadd.f32 0.0, %v1693
        %1695 = vdwg.mxu0
        %v1698 = vunpack.c.l.b16 %v1620
        %v1699 = vunpack.c.l.b16 %v1621
        %v1700 = vpack.c.b16 %v1699, %v1698
        %v1702 = vsel %vm493, %v1700, 0
        %1704 = vmatprep.subr.bf16.mxu0 %v1623
        %1705 = vmatpush1.bf16.msra.mxu0 %v1622
        %1706 = vmatprep.subr.bf16.mxu0 0
        %1707 = vmatpush1.bf16.msra.mxu0 0
        %1708 = vmatprep.subr.bf16.mxu0 0
        %1709 = vmatpush1.bf16.msra.mxu0 0
        %1710 = vmatprep.subr.bf16.mxu0 0
        %1711 = vmatpush1.bf16.msra.mxu0 0
        %1712 = vmatprep.subr.bf16.mxu0 0
        %1713 = vmatpush1.bf16.msra.mxu0 0
        %1714 = vmatprep.subr.bf16.mxu0 0
        %1715 = vmatpush1.bf16.msra.mxu0 0
        %1716 = vmatprep.subr.bf16.mxu0 0
        %1717 = vmatpush1.bf16.msra.mxu0 0
        %1718 = vmatprep.subr.bf16.mxu0 0
        %1719 = vmatpush1.bf16.msra.mxu0 0
        %1720 = vmatprep.subr.bf16.mxu0 0
        %1721 = vmatpush1.bf16.msra.mxu0 0
        %1722 = vmatprep.subr.bf16.mxu0 0
        %1723 = vmatpush1.bf16.msra.mxu0 0
        %1724 = vmatprep.subr.bf16.mxu0 0
        %1725 = vmatpush1.bf16.msra.mxu0 0
        %1726 = vmatprep.subr.bf16.mxu0 0
        %1727 = vmatpush1.bf16.msra.mxu0 0
        %1728 = vmatprep.subr.bf16.mxu0 0
        %1729 = vmatpush1.bf16.msra.mxu0 0
        %1730 = vmatprep.subr.bf16.mxu0 0
        %1731 = vmatpush1.bf16.msra.mxu0 0
        %1732 = vmatprep.subr.bf16.mxu0 0
        %1733 = vmatpush1.bf16.msra.mxu0 0
        %1734 = vmatprep.subr.bf16.mxu0 0
        %1735 = vmatpush1.bf16.msra.mxu0 0
        %1736 = vmatprep.mubr.bf16.mxu0 0
        %1737 = vmatmul.mubr.bf16.gmra.mrb[0].mxu0 %v1702
        %v1738 = vpop.f32.mrb[0].mxu0
        %v1739 = vadd.f32 %v1688, %v1738
        %v1740 = vpop.f32.mrb[0].mxu0
        %v1741 = vadd.f32 %v1690, %v1740
        %v1742 = vpop.f32.mrb[0].mxu0
        %v1743 = vadd.f32 %v1692, %v1742
        %v1744 = vpop.f32.mrb[0].mxu0
        %v1745 = vadd.f32 %v1694, %v1744
        %1746 = vdwg.mxu0
        %1747 = vrot.lane.b32.xlu0 %v1600, 15
        %v1748 = vpop.permute.xlu0 %1747
        %1749 = vrot.lane.b32.xlu0 %v1602, 15
        %v1750 = vpop.permute.xlu0 %1749
        %1751 = vrot.lane.b32.xlu0 %v1601, 15
        %v1752 = vpop.permute.xlu0 %1751
        %1753 = vrot.lane.b32.xlu0 %v1603, 15
        %v1754 = vpop.permute.xlu0 %1753
        %v1755 = vsel %vm837, %v1748, %v1752
        %v1756 = vsel %vm837, %v1750, %v1754
        %v1757 = vsel %vm837, %v1752, %v1748
        %v1758 = vsel %vm837, %v1754, %v1750
        %v1759 = vmul.f32 %v1757, %v848
        %v1760 = vmul.f32 %v1755, %v852
        %v1761 = vmul.f32 %v1758, %v848
        %v1762 = vmul.f32 %v1756, %v852
        %s1763 = scalar_lea.vmem [#allocation7], 16
        %v1764 = vld [vmem:[%s1763] sm:$0xf]
        %v1765 = vld [vmem:[%s1763 + $0x4] sm:$0xf]
        %v1766 = vpack.c.bf16 %v1761, %v1759
        %v1767 = vpack.c.bf16 %v1762, %v1760
        %v1770 = vunpack.c.l.b16 %v1764
        %v1771 = vunpack.c.l.b16 %v1765
        %v1772 = vpack.c.b16 %v1771, %v1770
        %v1774 = vsel %vm493, %v1772, 0
        %1776 = vmatprep.subr.bf16.mxu0 %v1767
        %1777 = vmatpush1.bf16.msra.mxu0 %v1766
        %1778 = vmatprep.subr.bf16.mxu0 0
        %1779 = vmatpush1.bf16.msra.mxu0 0
        %1780 = vmatprep.subr.bf16.mxu0 0
        %1781 = vmatpush1.bf16.msra.mxu0 0
        %1782 = vmatprep.subr.bf16.mxu0 0
        %1783 = vmatpush1.bf16.msra.mxu0 0
        %1784 = vmatprep.subr.bf16.mxu0 0
        %1785 = vmatpush1.bf16.msra.mxu0 0
        %1786 = vmatprep.subr.bf16.mxu0 0
        %1787 = vmatpush1.bf16.msra.mxu0 0
        %1788 = vmatprep.subr.bf16.mxu0 0
        %1789 = vmatpush1.bf16.msra.mxu0 0
        %1790 = vmatprep.subr.bf16.mxu0 0
        %1791 = vmatpush1.bf16.msra.mxu0 0
        %1792 = vmatprep.subr.bf16.mxu0 0
        %1793 = vmatpush1.bf16.msra.mxu0 0
        %1794 = vmatprep.subr.bf16.mxu0 0
        %1795 = vmatpush1.bf16.msra.mxu0 0
        %1796 = vmatprep.subr.bf16.mxu0 0
        %1797 = vmatpush1.bf16.msra.mxu0 0
        %1798 = vmatprep.subr.bf16.mxu0 0
        %1799 = vmatpush1.bf16.msra.mxu0 0
        %1800 = vmatprep.subr.bf16.mxu0 0
        %1801 = vmatpush1.bf16.msra.mxu0 0
        %1802 = vmatprep.subr.bf16.mxu0 0
        %1803 = vmatpush1.bf16.msra.mxu0 0
        %1804 = vmatprep.subr.bf16.mxu0 0
        %1805 = vmatpush1.bf16.msra.mxu0 0
        %1806 = vmatprep.subr.bf16.mxu0 0
        %1807 = vmatpush1.bf16.msra.mxu0 0
        %1808 = vmatprep.mubr.bf16.mxu0 0
        %1809 = vmatmul.mubr.bf16.gmra.mrb[0].mxu0 %v1774
        %v1810 = vpop.f32.mrb[0].mxu0
        %v1811 = vadd.f32 0.0, %v1810
        %v1812 = vpop.f32.mrb[0].mxu0
        %v1813 = vadd.f32 0.0, %v1812
        %v1814 = vpop.f32.mrb[0].mxu0
        %v1815 = vadd.f32 0.0, %v1814
        %v1816 = vpop.f32.mrb[0].mxu0
        %v1817 = vadd.f32 0.0, %v1816
        %1818 = vdwg.mxu0
        %v1819 = vadd.f32 %v1739, %v1811
        %v1820 = vadd.f32 %v1741, %v1813
        %v1821 = vadd.f32 %v1743, %v1815
        %v1822 = vadd.f32 %v1745, %v1817
        %1823 = vrot.lane.b32.xlu0 %v1600, 1
        %v1824 = vpop.permute.xlu0 %1823
        %1825 = vrot.lane.b32.xlu0 %v1602, 1
        %v1826 = vpop.permute.xlu0 %1825
        %1827 = vrot.lane.b32.xlu0 %v1601, 1
        %v1828 = vpop.permute.xlu0 %1827
        %1829 = vrot.lane.b32.xlu0 %v1603, 1
        %v1830 = vpop.permute.xlu0 %1829
        %v1831 = vsel %vm927, %v1824, %v1828
        %v1832 = vsel %vm927, %v1826, %v1830
        %v1833 = vsel %vm927, %v1828, %v1824
        %v1834 = vsel %vm927, %v1830, %v1826
        %v1835 = vmul.f32 %v1833, %v938
        %v1836 = vmul.f32 %v1831, %v942
        %v1837 = vmul.f32 %v1834, %v938
        %v1838 = vmul.f32 %v1832, %v942
        %s1839 = scalar_lea.vmem [#allocation7], 24
        %v1840 = vld [vmem:[%s1839] sm:$0xf]
        %v1841 = vld [vmem:[%s1839 + $0x4] sm:$0xf]
        %v1842 = vpack.c.bf16 %v1837, %v1835
        %v1843 = vpack.c.bf16 %v1838, %v1836
        %v1846 = vunpack.c.l.b16 %v1840
        %v1847 = vunpack.c.l.b16 %v1841
        %v1848 = vpack.c.b16 %v1847, %v1846
        %v1850 = vsel %vm493, %v1848, 0
        %1852 = vmatprep.subr.bf16.mxu0 %v1843
        %1853 = vmatpush1.bf16.msra.mxu0 %v1842
        %1854 = vmatprep.subr.bf16.mxu0 0
        %1855 = vmatpush1.bf16.msra.mxu0 0
        %1856 = vmatprep.subr.bf16.mxu0 0
        %1857 = vmatpush1.bf16.msra.mxu0 0
        %1858 = vmatprep.subr.bf16.mxu0 0
        %1859 = vmatpush1.bf16.msra.mxu0 0
        %1860 = vmatprep.subr.bf16.mxu0 0
        %1861 = vmatpush1.bf16.msra.mxu0 0
        %1862 = vmatprep.subr.bf16.mxu0 0
        %1863 = vmatpush1.bf16.msra.mxu0 0
        %1864 = vmatprep.subr.bf16.mxu0 0
        %1865 = vmatpush1.bf16.msra.mxu0 0
        %1866 = vmatprep.subr.bf16.mxu0 0
        %1867 = vmatpush1.bf16.msra.mxu0 0
        %1868 = vmatprep.subr.bf16.mxu0 0
        %1869 = vmatpush1.bf16.msra.mxu0 0
        %1870 = vmatprep.subr.bf16.mxu0 0
        %1871 = vmatpush1.bf16.msra.mxu0 0
        %1872 = vmatprep.subr.bf16.mxu0 0
        %1873 = vmatpush1.bf16.msra.mxu0 0
        %1874 = vmatprep.subr.bf16.mxu0 0
        %1875 = vmatpush1.bf16.msra.mxu0 0
        %1876 = vmatprep.subr.bf16.mxu0 0
        %1877 = vmatpush1.bf16.msra.mxu0 0
        %1878 = vmatprep.subr.bf16.mxu0 0
        %1879 = vmatpush1.bf16.msra.mxu0 0
        %1880 = vmatprep.subr.bf16.mxu0 0
        %1881 = vmatpush1.bf16.msra.mxu0 0
        %1882 = vmatprep.subr.bf16.mxu0 0
        %1883 = vmatpush1.bf16.msra.mxu0 0
        %1884 = vmatprep.mubr.bf16.mxu0 0
        %1885 = vmatmul.mubr.bf16.gmra.mrb[0].mxu0 %v1850
        %v1886 = vpop.f32.mrb[0].mxu0
        %v1887 = vadd.f32 0.0, %v1886
        %v1888 = vpop.f32.mrb[0].mxu0
        %v1889 = vadd.f32 0.0, %v1888
        %v1890 = vpop.f32.mrb[0].mxu0
        %v1891 = vadd.f32 0.0, %v1890
        %v1892 = vpop.f32.mrb[0].mxu0
        %v1893 = vadd.f32 0.0, %v1892
        %1894 = vdwg.mxu0
        %v1895 = vadd.f32 %v1819, %v1887
        %v1896 = vadd.f32 %v1820, %v1889
        %v1897 = vadd.f32 %v1821, %v1891
        %v1898 = vadd.f32 %v1822, %v1893
        %s1899 = scalar_lea.vmem [#allocation7], 32
        %v1900 = vld [vmem:[%s1899] sm:$0xf]
        %v1901 = vld [vmem:[%s1899 + $0x4] sm:$0xf]
        %v1902 = vpack.c.bf16 %v1602, %v1600
        %v1903 = vpack.c.bf16 %v1603, %v1601
        %v1906 = vunpack.c.l.b16 %v1900
        %v1907 = vunpack.c.l.b16 %v1901
        %v1908 = vpack.c.b16 %v1907, %v1906
        %v1910 = vsel %vm493, %v1908, 0
        %1912 = vmatprep.subr.bf16.mxu0 %v1903
        %1913 = vmatpush1.bf16.msra.mxu0 %v1902
        %1914 = vmatprep.subr.bf16.mxu0 0
        %1915 = vmatpush1.bf16.msra.mxu0 0
        %1916 = vmatprep.subr.bf16.mxu0 0
        %1917 = vmatpush1.bf16.msra.mxu0 0
        %1918 = vmatprep.subr.bf16.mxu0 0
        %1919 = vmatpush1.bf16.msra.mxu0 0
        %1920 = vmatprep.subr.bf16.mxu0 0
        %1921 = vmatpush1.bf16.msra.mxu0 0
        %1922 = vmatprep.subr.bf16.mxu0 0
        %1923 = vmatpush1.bf16.msra.mxu0 0
        %1924 = vmatprep.subr.bf16.mxu0 0
        %1925 = vmatpush1.bf16.msra.mxu0 0
        %1926 = vmatprep.subr.bf16.mxu0 0
        %1927 = vmatpush1.bf16.msra.mxu0 0
        %1928 = vmatprep.subr.bf16.mxu0 0
        %1929 = vmatpush1.bf16.msra.mxu0 0
        %1930 = vmatprep.subr.bf16.mxu0 0
        %1931 = vmatpush1.bf16.msra.mxu0 0
        %1932 = vmatprep.subr.bf16.mxu0 0
        %1933 = vmatpush1.bf16.msra.mxu0 0
        %1934 = vmatprep.subr.bf16.mxu0 0
        %1935 = vmatpush1.bf16.msra.mxu0 0
        %1936 = vmatprep.subr.bf16.mxu0 0
        %1937 = vmatpush1.bf16.msra.mxu0 0
        %1938 = vmatprep.subr.bf16.mxu0 0
        %1939 = vmatpush1.bf16.msra.mxu0 0
        %1940 = vmatprep.subr.bf16.mxu0 0
        %1941 = vmatpush1.bf16.msra.mxu0 0
        %1942 = vmatprep.subr.bf16.mxu0 0
        %1943 = vmatpush1.bf16.msra.mxu0 0
        %1944 = vmatprep.mubr.bf16.mxu0 0
        %1945 = vmatmul.mubr.bf16.gmra.mrb[0].mxu0 %v1910
        %v1946 = vpop.f32.mrb[0].mxu0
        %v1947 = vadd.f32 0.0, %v1946
        %v1948 = vpop.f32.mrb[0].mxu0
        %v1949 = vadd.f32 0.0, %v1948
        %v1950 = vpop.f32.mrb[0].mxu0
        %v1951 = vadd.f32 0.0, %v1950
        %v1952 = vpop.f32.mrb[0].mxu0
        %v1953 = vadd.f32 0.0, %v1952
        %1954 = vdwg.mxu0
        %v1955 = vadd.f32 %v1895, %v1947
        %v1956 = vadd.f32 %v1896, %v1949
        %v1957 = vadd.f32 %v1897, %v1951
        %v1958 = vadd.f32 %v1898, %v1953
        %1959 = vrot.lane.b32.xlu0 %v1600, 127
        %v1960 = vpop.permute.xlu0 %1959
        %1961 = vrot.lane.b32.xlu0 %v1602, 127
        %v1962 = vpop.permute.xlu0 %1961
        %1963 = vrot.lane.b32.xlu0 %v1601, 127
        %v1964 = vpop.permute.xlu0 %1963
        %1965 = vrot.lane.b32.xlu0 %v1603, 127
        %v1966 = vpop.permute.xlu0 %1965
        %v1967 = vsel %vm1077, %v1960, %v1964
        %v1968 = vsel %vm1077, %v1962, %v1966
        %v1969 = vsel %vm1077, %v1964, %v1960
        %v1970 = vsel %vm1077, %v1966, %v1962
        %v1971 = vmul.f32 %v1967, %v1088
        %v1972 = vmul.f32 %v1969, %v1092
        %v1973 = vmul.f32 %v1968, %v1088
        %v1974 = vmul.f32 %v1970, %v1092
        %s1975 = scalar_lea.vmem [#allocation7], 40
        %v1976 = vld [vmem:[%s1975] sm:$0xf]
        %v1977 = vld [vmem:[%s1975 + $0x4] sm:$0xf]
        %v1978 = vpack.c.bf16 %v1973, %v1971
        %v1979 = vpack.c.bf16 %v1974, %v1972
        %v1982 = vunpack.c.l.b16 %v1976
        %v1983 = vunpack.c.l.b16 %v1977
        %v1984 = vpack.c.b16 %v1983, %v1982
        %v1986 = vsel %vm493, %v1984, 0
        %1988 = vmatprep.subr.bf16.mxu0 %v1979
        %1989 = vmatpush1.bf16.msra.mxu0 %v1978
        %1990 = vmatprep.subr.bf16.mxu0 0
        %1991 = vmatpush1.bf16.msra.mxu0 0
        %1992 = vmatprep.subr.bf16.mxu0 0
        %1993 = vmatpush1.bf16.msra.mxu0 0
        %1994 = vmatprep.subr.bf16.mxu0 0
        %1995 = vmatpush1.bf16.msra.mxu0 0
        %1996 = vmatprep.subr.bf16.mxu0 0
        %1997 = vmatpush1.bf16.msra.mxu0 0
        %1998 = vmatprep.subr.bf16.mxu0 0
        %1999 = vmatpush1.bf16.msra.mxu0 0
        %2000 = vmatprep.subr.bf16.mxu0 0
        %2001 = vmatpush1.bf16.msra.mxu0 0
        %2002 = vmatprep.subr.bf16.mxu0 0
        %2003 = vmatpush1.bf16.msra.mxu0 0
        %2004 = vmatprep.subr.bf16.mxu0 0
        %2005 = vmatpush1.bf16.msra.mxu0 0
        %2006 = vmatprep.subr.bf16.mxu0 0
        %2007 = vmatpush1.bf16.msra.mxu0 0
        %2008 = vmatprep.subr.bf16.mxu0 0
        %2009 = vmatpush1.bf16.msra.mxu0 0
        %2010 = vmatprep.subr.bf16.mxu0 0
        %2011 = vmatpush1.bf16.msra.mxu0 0
        %2012 = vmatprep.subr.bf16.mxu0 0
        %2013 = vmatpush1.bf16.msra.mxu0 0
        %2014 = vmatprep.subr.bf16.mxu0 0
        %2015 = vmatpush1.bf16.msra.mxu0 0
        %2016 = vmatprep.subr.bf16.mxu0 0
        %2017 = vmatpush1.bf16.msra.mxu0 0
        %2018 = vmatprep.subr.bf16.mxu0 0
        %2019 = vmatpush1.bf16.msra.mxu0 0
        %2020 = vmatprep.mubr.bf16.mxu0 0
        %2021 = vmatmul.mubr.bf16.gmra.mrb[0].mxu0 %v1986
        %v2022 = vpop.f32.mrb[0].mxu0
        %v2023 = vadd.f32 0.0, %v2022
        %v2024 = vpop.f32.mrb[0].mxu0
        %v2025 = vadd.f32 0.0, %v2024
        %v2026 = vpop.f32.mrb[0].mxu0
        %v2027 = vadd.f32 0.0, %v2026
        %v2028 = vpop.f32.mrb[0].mxu0
        %v2029 = vadd.f32 0.0, %v2028
        %2030 = vdwg.mxu0
        %v2031 = vadd.f32 %v1955, %v2023
        %v2032 = vadd.f32 %v1956, %v2025
        %v2033 = vadd.f32 %v1957, %v2027
        %v2034 = vadd.f32 %v1958, %v2029
        %2035 = vrot.lane.b32.xlu0 %v1600, 113
        %v2036 = vpop.permute.xlu0 %2035
        %2037 = vrot.lane.b32.xlu0 %v1602, 113
        %v2038 = vpop.permute.xlu0 %2037
        %2039 = vrot.lane.b32.xlu0 %v1601, 113
        %v2040 = vpop.permute.xlu0 %2039
        %2041 = vrot.lane.b32.xlu0 %v1603, 113
        %v2042 = vpop.permute.xlu0 %2041
        %v2043 = vsel %vm1167, %v2036, %v2040
        %v2044 = vsel %vm1167, %v2038, %v2042
        %v2045 = vsel %vm1167, %v2040, %v2036
        %v2046 = vsel %vm1167, %v2042, %v2038
        %v2047 = vmul.f32 %v2043, %v1178
        %v2048 = vmul.f32 %v2045, %v1182
        %v2049 = vmul.f32 %v2044, %v1178
        %v2050 = vmul.f32 %v2046, %v1182
        %s2051 = scalar_lea.vmem [#allocation7], 48
        %v2052 = vld [vmem:[%s2051] sm:$0xf]
        %v2053 = vld [vmem:[%s2051 + $0x4] sm:$0xf]
        %v2054 = vpack.c.bf16 %v2049, %v2047
        %v2055 = vpack.c.bf16 %v2050, %v2048
        %v2058 = vunpack.c.l.b16 %v2052
        %v2059 = vunpack.c.l.b16 %v2053
        %v2060 = vpack.c.b16 %v2059, %v2058
        %v2062 = vsel %vm493, %v2060, 0
        %2064 = vmatprep.subr.bf16.mxu0 %v2055
        %2065 = vmatpush1.bf16.msra.mxu0 %v2054
        %2066 = vmatprep.subr.bf16.mxu0 0
        %2067 = vmatpush1.bf16.msra.mxu0 0
        %2068 = vmatprep.subr.bf16.mxu0 0
        %2069 = vmatpush1.bf16.msra.mxu0 0
        %2070 = vmatprep.subr.bf16.mxu0 0
        %2071 = vmatpush1.bf16.msra.mxu0 0
        %2072 = vmatprep.subr.bf16.mxu0 0
        %2073 = vmatpush1.bf16.msra.mxu0 0
        %2074 = vmatprep.subr.bf16.mxu0 0
        %2075 = vmatpush1.bf16.msra.mxu0 0
        %2076 = vmatprep.subr.bf16.mxu0 0
        %2077 = vmatpush1.bf16.msra.mxu0 0
        %2078 = vmatprep.subr.bf16.mxu0 0
        %2079 = vmatpush1.bf16.msra.mxu0 0
        %2080 = vmatprep.subr.bf16.mxu0 0
        %2081 = vmatpush1.bf16.msra.mxu0 0
        %2082 = vmatprep.subr.bf16.mxu0 0
        %2083 = vmatpush1.bf16.msra.mxu0 0
        %2084 = vmatprep.subr.bf16.mxu0 0
        %2085 = vmatpush1.bf16.msra.mxu0 0
        %2086 = vmatprep.subr.bf16.mxu0 0
        %2087 = vmatpush1.bf16.msra.mxu0 0
        %2088 = vmatprep.subr.bf16.mxu0 0
        %2089 = vmatpush1.bf16.msra.mxu0 0
        %2090 = vmatprep.subr.bf16.mxu0 0
        %2091 = vmatpush1.bf16.msra.mxu0 0
        %2092 = vmatprep.subr.bf16.mxu0 0
        %2093 = vmatpush1.bf16.msra.mxu0 0
        %2094 = vmatprep.subr.bf16.mxu0 0
        %2095 = vmatpush1.bf16.msra.mxu0 0
        %2096 = vmatprep.mubr.bf16.mxu0 0
        %2097 = vmatmul.mubr.bf16.gmra.mrb[0].mxu0 %v2062
        %v2098 = vpop.f32.mrb[0].mxu0
        %v2099 = vadd.f32 0.0, %v2098
        %v2100 = vpop.f32.mrb[0].mxu0
        %v2101 = vadd.f32 0.0, %v2100
        %v2102 = vpop.f32.mrb[0].mxu0
        %v2103 = vadd.f32 0.0, %v2102
        %v2104 = vpop.f32.mrb[0].mxu0
        %v2105 = vadd.f32 0.0, %v2104
        %2106 = vdwg.mxu0
        %v2107 = vadd.f32 %v2031, %v2099
        %v2108 = vadd.f32 %v2032, %v2101
        %v2109 = vadd.f32 %v2033, %v2103
        %v2110 = vadd.f32 %v2034, %v2105
        %2111 = vrot.lane.b32.xlu0 %v1600, 112
        %v2112 = vpop.permute.xlu0 %2111
        %2113 = vrot.lane.b32.xlu0 %v1602, 112
        %v2114 = vpop.permute.xlu0 %2113
        %2115 = vrot.lane.b32.xlu0 %v1601, 112
        %v2116 = vpop.permute.xlu0 %2115
        %2117 = vrot.lane.b32.xlu0 %v1603, 112
        %v2118 = vpop.permute.xlu0 %2117
        %v2119 = vsel %vm1257, %v2112, %v2116
        %v2120 = vsel %vm1257, %v2114, %v2118
        %v2121 = vsel %vm1257, %v2116, %v2112
        %v2122 = vsel %vm1257, %v2118, %v2114
        %v2123 = vmul.f32 %v2119, %v1268
        %v2124 = vmul.f32 %v2121, %v1272
        %v2125 = vmul.f32 %v2120, %v1268
        %v2126 = vmul.f32 %v2122, %v1272
        %s2127 = scalar_lea.vmem [#allocation7], 56
        %v2128 = vld [vmem:[%s2127] sm:$0xf]
        %v2129 = vld [vmem:[%s2127 + $0x4] sm:$0xf]
        %v2130 = vpack.c.bf16 %v2125, %v2123
        %v2131 = vpack.c.bf16 %v2126, %v2124
        %v2134 = vunpack.c.l.b16 %v2128
        %v2135 = vunpack.c.l.b16 %v2129
        %v2136 = vpack.c.b16 %v2135, %v2134
        %v2138 = vsel %vm493, %v2136, 0
        %2140 = vmatprep.subr.bf16.mxu0 %v2131
        %2141 = vmatpush1.bf16.msra.mxu0 %v2130
        %2142 = vmatprep.subr.bf16.mxu0 0
        %2143 = vmatpush1.bf16.msra.mxu0 0
        %2144 = vmatprep.subr.bf16.mxu0 0
        %2145 = vmatpush1.bf16.msra.mxu0 0
        %2146 = vmatprep.subr.bf16.mxu0 0
        %2147 = vmatpush1.bf16.msra.mxu0 0
        %2148 = vmatprep.subr.bf16.mxu0 0
        %2149 = vmatpush1.bf16.msra.mxu0 0
        %2150 = vmatprep.subr.bf16.mxu0 0
        %2151 = vmatpush1.bf16.msra.mxu0 0
        %2152 = vmatprep.subr.bf16.mxu0 0
        %2153 = vmatpush1.bf16.msra.mxu0 0
        %2154 = vmatprep.subr.bf16.mxu0 0
        %2155 = vmatpush1.bf16.msra.mxu0 0
        %2156 = vmatprep.subr.bf16.mxu0 0
        %2157 = vmatpush1.bf16.msra.mxu0 0
        %2158 = vmatprep.subr.bf16.mxu0 0
        %2159 = vmatpush1.bf16.msra.mxu0 0
        %2160 = vmatprep.subr.bf16.mxu0 0
        %2161 = vmatpush1.bf16.msra.mxu0 0
        %2162 = vmatprep.subr.bf16.mxu0 0
        %2163 = vmatpush1.bf16.msra.mxu0 0
        %2164 = vmatprep.subr.bf16.mxu0 0
        %2165 = vmatpush1.bf16.msra.mxu0 0
        %2166 = vmatprep.subr.bf16.mxu0 0
        %2167 = vmatpush1.bf16.msra.mxu0 0
        %2168 = vmatprep.subr.bf16.mxu0 0
        %2169 = vmatpush1.bf16.msra.mxu0 0
        %2170 = vmatprep.subr.bf16.mxu0 0
        %2171 = vmatpush1.bf16.msra.mxu0 0
        %2172 = vmatprep.mubr.bf16.mxu0 0
        %2173 = vmatmul.mubr.bf16.gmra.mrb[0].mxu0 %v2138
        %v2174 = vpop.f32.mrb[0].mxu0
        %v2175 = vadd.f32 0.0, %v2174
        %v2176 = vpop.f32.mrb[0].mxu0
        %v2177 = vadd.f32 0.0, %v2176
        %v2178 = vpop.f32.mrb[0].mxu0
        %v2179 = vadd.f32 0.0, %v2178
        %v2180 = vpop.f32.mrb[0].mxu0
        %v2181 = vadd.f32 0.0, %v2180
        %2182 = vdwg.mxu0
        %v2183 = vadd.f32 %v2107, %v2175
        %v2184 = vadd.f32 %v2108, %v2177
        %v2185 = vadd.f32 %v2109, %v2179
        %v2186 = vadd.f32 %v2110, %v2181
        %2187 = vrot.lane.b32.xlu0 %v1600, 111
        %v2188 = vpop.permute.xlu0 %2187
        %2189 = vrot.lane.b32.xlu0 %v1602, 111
        %v2190 = vpop.permute.xlu0 %2189
        %2191 = vrot.lane.b32.xlu0 %v1601, 111
        %v2192 = vpop.permute.xlu0 %2191
        %2193 = vrot.lane.b32.xlu0 %v1603, 111
        %v2194 = vpop.permute.xlu0 %2193
        %v2195 = vsel %vm1347, %v2188, %v2192
        %v2196 = vsel %vm1347, %v2190, %v2194
        %v2197 = vsel %vm1347, %v2192, %v2188
        %v2198 = vsel %vm1347, %v2194, %v2190
        %v2199 = vmul.f32 %v2195, %v1358
        %v2200 = vmul.f32 %v2197, %v1362
        %v2201 = vmul.f32 %v2196, %v1358
        %v2202 = vmul.f32 %v2198, %v1362
        %s2203 = scalar_lea.vmem [#allocation7], 64
        %v2204 = vld [vmem:[%s2203] sm:$0xf]
        %v2205 = vld [vmem:[%s2203 + $0x4] sm:$0xf]
        %v2206 = vpack.c.bf16 %v2201, %v2199
        %v2207 = vpack.c.bf16 %v2202, %v2200
        %v2210 = vunpack.c.l.b16 %v2204
        %v2211 = vunpack.c.l.b16 %v2205
        %v2212 = vpack.c.b16 %v2211, %v2210
        %v2214 = vsel %vm493, %v2212, 0
        %2216 = vmatprep.subr.bf16.mxu0 %v2207
        %2217 = vmatpush1.bf16.msra.mxu0 %v2206
        %2218 = vmatprep.subr.bf16.mxu0 0
        %2219 = vmatpush1.bf16.msra.mxu0 0
        %2220 = vmatprep.subr.bf16.mxu0 0
        %2221 = vmatpush1.bf16.msra.mxu0 0
        %2222 = vmatprep.subr.bf16.mxu0 0
        %2223 = vmatpush1.bf16.msra.mxu0 0
        %2224 = vmatprep.subr.bf16.mxu0 0
        %2225 = vmatpush1.bf16.msra.mxu0 0
        %2226 = vmatprep.subr.bf16.mxu0 0
        %2227 = vmatpush1.bf16.msra.mxu0 0
        %2228 = vmatprep.subr.bf16.mxu0 0
        %2229 = vmatpush1.bf16.msra.mxu0 0
        %2230 = vmatprep.subr.bf16.mxu0 0
        %2231 = vmatpush1.bf16.msra.mxu0 0
        %2232 = vmatprep.subr.bf16.mxu0 0
        %2233 = vmatpush1.bf16.msra.mxu0 0
        %2234 = vmatprep.subr.bf16.mxu0 0
        %2235 = vmatpush1.bf16.msra.mxu0 0
        %2236 = vmatprep.subr.bf16.mxu0 0
        %2237 = vmatpush1.bf16.msra.mxu0 0
        %2238 = vmatprep.subr.bf16.mxu0 0
        %2239 = vmatpush1.bf16.msra.mxu0 0
        %2240 = vmatprep.subr.bf16.mxu0 0
        %2241 = vmatpush1.bf16.msra.mxu0 0
        %2242 = vmatprep.subr.bf16.mxu0 0
        %2243 = vmatpush1.bf16.msra.mxu0 0
        %2244 = vmatprep.subr.bf16.mxu0 0
        %2245 = vmatpush1.bf16.msra.mxu0 0
        %2246 = vmatprep.subr.bf16.mxu0 0
        %2247 = vmatpush1.bf16.msra.mxu0 0
        %2248 = vmatprep.mubr.bf16.mxu0 0
        %2249 = vmatmul.mubr.bf16.gmra.mrb[0].mxu0 %v2214
        %v2250 = vpop.f32.mrb[0].mxu0
        %v2251 = vadd.f32 0.0, %v2250
        %v2252 = vpop.f32.mrb[0].mxu0
        %v2253 = vadd.f32 0.0, %v2252
        %v2254 = vpop.f32.mrb[0].mxu0
        %v2255 = vadd.f32 0.0, %v2254
        %v2256 = vpop.f32.mrb[0].mxu0
        %v2257 = vadd.f32 0.0, %v2256
        %2258 = vdwg.mxu0
        %v2259 = vadd.f32 %v2183, %v2251
        %v2260 = vadd.f32 %v2184, %v2253
        %v2261 = vadd.f32 %v2185, %v2255
        %v2262 = vadd.f32 %v2186, %v2257
        %v2263 = vadd.f32 %v2259, %v468
        %v2264 = vadd.f32 %v2260, %v469
        %v2265 = vadd.f32 %v2261, %v470
        %v2266 = vadd.f32 %v2262, %v471
        %2267 = vst [vmem:[%s466] sm:$0xff] %v2263
        %2268 = vst [vmem:[%s466 + $0x8] sm:$0xff] %v2264
        %2269 = vst [vmem:[%s466 + $0x10] sm:$0xff] %v2265
        %2270 = vst [vmem:[%s466 + $0x18] sm:$0xff] %v2266
        %s2271 = sand.u32 %s232, 1
        %s2272 = scalar_lea.sflag [#allocation4], %s2271
        %s2273 = sand.u32 %s232, 1
        %s2274 = smul.addr %s2273, 32
        %s2275 = scalar_lea.vmem [#allocation17], %s2274
        // Predicated region
        $region93: #{tpu_custom_call.1} parent=55 // pred_check
          %p2276 = pneg %p242
        $region94: #{tpu_custom_call.1} parent=55 // pred_check_branch
          %2278 = sbr.rel (%p2276) target = $region96
        $region95: #{tpu_custom_call.1} parent=55 // pred_region
          %s2280 = ssub.s32 512, 512
          %2281 = vsyncadd %s2272, %s2280
          %s2282 = smul.addr %s30, 4
          %s2283 = smul.addr %s2282, 128
          %s2284 = scalar_lea.hbm %s9, %s2283
          %s2285 = sshll.u32 %s2275, 4
          %s2286 = int_to_ptr.vmem [resolvable:$true] %s2285
          %2291 = dma.vmem_to_hbm [thread:$0]  %s2286, 512, %s2284, %s2272, 256, 256, 16
        $region96: #{tpu_custom_call.1} parent=55 // pred_fallthru
          _
      $region56: #{tpu_custom_call.1} parent=5 // pred_fallthru
        _
      %p2292 = scmp.le.s32.totalorder 2, %s25
      // Predicated region
      $region97: #{tpu_custom_call.1} parent=5 // pred_check
        %p2293 = pneg %p2292
      $region98: #{tpu_custom_call.1} parent=5 // pred_check_branch
        %2295 = sbr.rel (%p2293) target = $region100
      $region99: #{tpu_custom_call.1} parent=5 // pred_region
        %s2296 = ssub.s32 %s25, 2
        // Predicated region
        $region101: #{tpu_custom_call.1} parent=99 // pred_check
          %p2297 = pneg %p248
        $region102: #{tpu_custom_call.1} parent=99 // pred_check_branch
          %2299 = sbr.rel (%p2297) target = $region104
        $region103: #{tpu_custom_call.1} parent=99 // pred_region
          %s2300 = sand.u32 %s233, 1
          %s2301 = scalar_lea.sflag [#allocation4], %s2300
          %s2302 = sand.u32 %s233, 1
          %s2303 = smul.addr %s2302, 32
          %s2304 = scalar_lea.vmem [#allocation17], %s2303
          %2305 = dma.done %s2301, 512
        $region104: #{tpu_custom_call.1} parent=99 // pred_fallthru
          _
      $region100: #{tpu_custom_call.1} parent=5 // pred_fallthru
        _
    $region6: #{tpu_custom_call.1} parent=1 // loop_footer
      %s29 = sadd.s32 1, %s25
    $region7: #{tpu_custom_call.1} parent=1 // loop_footer_branch
      %24 = sbr.rel target = $region3
    $region8: #{tpu_custom_call.1} parent=1 // loop_exit
      _
    %2306 = vsyncpa [#allocation3], 1
    %s2307 = scalar_lea.sflag [#allocation3], 1
    %2308 = vsyncpa %s2307, 1
    %2309 = vsyncpa [#allocation6], 1
    %2310 = vsyncpa [#allocation9], 1
    %2311 = vsyncpa [#allocation12], 1
    %2312 = vsyncpa [#allocation15], 1
    %2313 = vsyncpa [#allocation4], 1
    %s2314 = scalar_lea.sflag [#allocation4], 1
    %2315 = vsyncpa %s2314, 1

</llo_original>
